<compile_context>
chip_gen: v7x
topology: tpu7x:2x2x1
jax: 0.10.0
libtpu: 0.0.40
codegen_flags: <defaults>
</compile_context>

<pallas_src>
import functools

import jax
import jax.numpy as jnp
from jax import lax
from jax.experimental import pallas as pl
from jax.experimental.pallas import tpu as pltpu

EPS = 1e-5


def _banded_conv_weights(w_hwio, width):
    """Fold the horizontal taps (kw) + channel mix of a 3x3 conv into a
    block-banded row-GEMM weight.

    w_hwio: (3, 3, Cin, Cout) -> (3, width*Cin, width*Cout) with
      Wm[kh, wi*Cin+ci, wo*Cout+co] = w[kh, wi-wo+1, ci, co] if |wi-wo| <= 1
                                      0                      otherwise
    so that conv(x)[n,h] = sum_kh x_rows[n, h+kh-1] @ Wm[kh]  (zero rows above
    and below each image), i.e. padding=1 in W is handled by the band.
    """
    kh_taps, kw_taps, cin, cout = w_hwio.shape
    wi = jnp.arange(width)[:, None]
    wo = jnp.arange(width)[None, :]
    kw = wi - wo + 1                                    # (W, W)
    valid = (kw >= 0) & (kw < kw_taps)
    kw_c = jnp.clip(kw, 0, kw_taps - 1)
    wm = w_hwio[:, kw_c]                                # (3, W, W, Cin, Cout)
    wm = jnp.where(valid[None, :, :, None, None], wm, 0.0)
    wm = wm.transpose(0, 1, 3, 2, 4)                    # (3, W, Cin, W, Cout)
    return wm.reshape(kh_taps, width * cin, width * cout)


def basic_block_kernel(x_ref, wm1_ref, wm2_ref, g1_ref, b1_ref, g2_ref,
                       b2_ref, out_ref, pad_ref):
    N, Hp, WC = pad_ref.shape
    H = Hp - 2
    C = g1_ref.shape[-1]
    W = WC // C
    NH = N * H
    inv_cnt = 1.0 / float(N * H * W)

    # Channel fold / spread matrices (tiny constants, built once, reused by
    # both BN stages):
    #   sel  (WC, C): sel[j, c]  = 1 if j % C == c   -> per-channel reduction
    #   selT (C, WC): selT[c, j] = 1 if j % C == c   -> per-channel broadcast
    j_idx = lax.broadcasted_iota(jnp.int32, (WC, C), 0) % C
    c_idx = lax.broadcasted_iota(jnp.int32, (WC, C), 1)
    sel = (j_idx == c_idx).astype(jnp.float32)
    jt_idx = lax.broadcasted_iota(jnp.int32, (C, WC), 1) % C
    ct_idx = lax.broadcasted_iota(jnp.int32, (C, WC), 0)
    selT = (jt_idx == ct_idx).astype(jnp.float32)

    # --- stage the row-padded conv1 input: zero ONLY the 1-row halo ---------
    zero_row = jnp.zeros((N, 1, WC), jnp.float32)
    pad_ref[:, 0:1, :] = zero_row
    pad_ref[:, Hp - 1:Hp, :] = zero_row
    pad_ref[:, 1:H + 1, :] = x_ref[...]

    def conv3x3(wm_ref):
        """3 row-shifted (NH, WC) x (WC, WC) MXU matmuls (kw folded into K)."""
        acc = jnp.zeros((NH, WC), jnp.float32)
        for kh in range(3):
            rows = pad_ref[:, kh:kh + H, :].reshape(NH, WC)
            acc = acc + jnp.dot(rows, wm_ref[kh],
                                preferred_element_type=jnp.float32)
        return acc

    def bn_train(y, g_ref, b_ref):
        """Training-mode BatchNorm fused to one stats traversal + one
        scale/shift pass (biased variance, eps=1e-5, batch statistics)."""
        col_s = jnp.sum(y, axis=0, keepdims=True)        # (1, WC)
        col_sq = jnp.sum(y * y, axis=0, keepdims=True)   # (1, WC)
        s = jnp.dot(col_s, sel, preferred_element_type=jnp.float32)   # (1, C)
        sq = jnp.dot(col_sq, sel, preferred_element_type=jnp.float32)
        mean = s * inv_cnt
        var = sq * inv_cnt - mean * mean                 # biased variance
        scale = g_ref[...] * lax.rsqrt(var + EPS)        # (1, C)
        shift = b_ref[...] - mean * scale
        scale_row = jnp.dot(scale, selT, preferred_element_type=jnp.float32)
        shift_row = jnp.dot(shift, selT, preferred_element_type=jnp.float32)
        return y * scale_row + shift_row

    # conv1 -> bn1 -> relu
    y1 = jnp.maximum(bn_train(conv3x3(wm1_ref), g1_ref, b1_ref), 0.0)

    # restage padded input for conv2 (halo rows are still zero)
    pad_ref[:, 1:H + 1, :] = y1.reshape(N, H, WC)

    # conv2 -> bn2
    y2 = bn_train(conv3x3(wm2_ref), g2_ref, b2_ref)

    # residual add (downsample=None, stride=1) + relu; aligned residual load
    residual = x_ref[...].reshape(NH, WC)
    out_ref[...] = jnp.maximum(y2 + residual, 0.0)


def basic_block_nhwc(x_nhwc, w1, w2, g1, b1, g2, b2):
    """x_nhwc: (N, H, W, C) f32; w1/w2: HWIO (3,3,C,C); g/b: (1, C)."""
    N, H, W, Cin = x_nhwc.shape
    Cout = w1.shape[-1]
    if Cin != Cout:
        # This BasicBlock config (stride=1, downsample=None) requires it.
        raise ValueError("basic_block kernel requires Cin == Cout")
    WC = W * Cout

    x_rows = x_nhwc.reshape(N, H, WC)                 # lane-dense row layout
    wm1 = _banded_conv_weights(w1, W)                 # (3, WC, WC)
    wm2 = _banded_conv_weights(w2, W)

    flops = 2 * 2 * (N * H) * 3 * WC * WC             # two convs, 3 taps each
    bytes_accessed = 4 * (2 * N * H * WC + 2 * 3 * WC * WC + 4 * Cout)

    vmem = pl.BlockSpec(memory_space=pltpu.MemorySpace.VMEM)
    out2d = pl.pallas_call(
        basic_block_kernel,
        out_shape=jax.ShapeDtypeStruct((N * H, WC), jnp.float32),
        in_specs=[vmem] * 7,
        out_specs=vmem,
        scratch_shapes=[pltpu.VMEM((N, H + 2, WC), jnp.float32)],
        cost_estimate=pl.CostEstimate(flops=flops,
                                      transcendentals=2 * Cout,
                                      bytes_accessed=bytes_accessed),
    )(x_rows, wm1, wm2, g1, b1, g2, b2)
    return out2d.reshape(N, H, W, Cout)


@jax.jit
def basic_block_nchw(x_nchw, w1, w2, g1, b1, g2, b2):
    """PyTorch-facing wrapper: NCHW in, NCHW out."""
    x_nhwc = jnp.transpose(x_nchw, (0, 2, 3, 1))
    out_nhwc = basic_block_nhwc(x_nhwc, w1, w2, g1, b1, g2, b2)
    return jnp.transpose(out_nhwc, (0, 3, 1, 2))


# ---------------- pure-JAX reference (correctness sanity check) -------------
def _ref_bn_train(x_nhwc, gamma, beta):
    mean = jnp.mean(x_nhwc, axis=(0, 1, 2), keepdims=True)
    var = jnp.mean((x_nhwc - mean) ** 2, axis=(0, 1, 2), keepdims=True)
    return (x_nhwc - mean) * lax.rsqrt(var + EPS) * gamma.reshape(
        1, 1, 1, -1) + beta.reshape(1, 1, 1, -1)


def _ref_conv3x3(x_nhwc, w_hwio):
    return lax.conv_general_dilated(
        x_nhwc, w_hwio, window_strides=(1, 1), padding=((1, 1), (1, 1)),
        dimension_numbers=("NHWC", "HWIO", "NHWC"))


def basic_block_reference(x_nhwc, w1, w2, g1, b1, g2, b2):
    out = _ref_conv3x3(x_nhwc, w1)
    out = jnp.maximum(_ref_bn_train(out, g1[0], b1[0]), 0.0)
    out = _ref_conv3x3(out, w2)
    out = _ref_bn_train(out, g2[0], b2[0]) + x_nhwc
    return jnp.maximum(out, 0.0)


if __name__ == "__main__":
    # BasicBlock(inplanes=4, planes=4, stride=1, downsample=None)
    N, C, H, W = 2, 4, 16, 16

    key = jax.random.PRNGKey(0)
    kx, kw1, kw2 = jax.random.split(key, 3)

    x_nchw = jax.random.normal(kx, (N, C, H, W), dtype=jnp.float32)

    # conv weights in HWIO layout (PyTorch stores OIHW)
    w1 = 0.1 * jax.random.normal(kw1, (3, 3, C, C), dtype=jnp.float32)
    w2 = 0.1 * jax.random.normal(kw2, (3, 3, C, C), dtype=jnp.float32)

    # BatchNorm2d default init: weight=1, bias=0
    g1 = jnp.ones((1, C), jnp.float32)
    b1 = jnp.zeros((1, C), jnp.float32)
    g2 = jnp.ones((1, C), jnp.float32)
    b2 = jnp.zeros((1, C), jnp.float32)

    out = basic_block_nchw(x_nchw, w1, w2, g1, b1, g2, b2)
    out = jax.block_until_ready(out)

    # sanity check against a pure-JAX reference
    ref = basic_block_reference(
        jnp.transpose(x_nchw, (0, 2, 3, 1)), w1, w2, g1, b1, g2, b2)
    ref = jnp.transpose(ref, (0, 3, 1, 2))
    assert out.shape == (N, C, H, W)
    assert jnp.allclose(out, ref, rtol=2e-3, atol=2e-3), "mismatch vs reference"

    print("KERNEL_OK")
</pallas_src>

<mosaic_0001>
module attributes {stable_mosaic.version = 11 : i64} {
  func.func @basic_block_kernel(%arg0: memref<2x16x64xf32, #tpu.memory_space<vmem>>, %arg1: memref<3x64x64xf32, #tpu.memory_space<vmem>>, %arg2: memref<3x64x64xf32, #tpu.memory_space<vmem>>, %arg3: memref<1x4xf32, #tpu.memory_space<vmem>>, %arg4: memref<1x4xf32, #tpu.memory_space<vmem>>, %arg5: memref<1x4xf32, #tpu.memory_space<vmem>>, %arg6: memref<1x4xf32, #tpu.memory_space<vmem>>, %arg7: memref<32x64xf32, #tpu.memory_space<vmem>>, %arg8: memref<2x18x64xf32, #tpu.memory_space<vmem>>) attributes {dimension_semantics = [], scalar_prefetch = 0 : i64, scratch_operands = 1 : i64, tpu.core_type = #tpu.core_type<tc>} {
    %0 = tpu.iota {dimensions = array<i32: 0>} : vector<64x4xi32>
    %c4_i32 = arith.constant 4 : i32
    %c0_i32 = arith.constant 0 : i32
    %1 = arith.cmpi eq, %c4_i32, %c0_i32 : i32
    %c1_i32 = arith.constant 1 : i32
    %2 = arith.select %1, %c1_i32, %c4_i32 : i32
    %3 = vector.broadcast %2 : i32 to vector<64x4xi32>
    %4 = arith.remsi %0, %3 : vector<64x4xi32>
    %c0_i32_0 = arith.constant 0 : i32
    %5 = vector.broadcast %c0_i32_0 : i32 to vector<64x4xi32>
    %6 = arith.cmpi ne, %4, %5 : vector<64x4xi32>
    %c0_i32_1 = arith.constant 0 : i32
    %7 = vector.broadcast %c0_i32_1 : i32 to vector<64x4xi32>
    %8 = arith.cmpi slt, %4, %7 : vector<64x4xi32>
    %c0_i32_2 = arith.constant 0 : i32
    %9 = arith.cmpi slt, %2, %c0_i32_2 : i32
    %10 = vector.broadcast %9 : i1 to vector<64x4xi1>
    %11 = vector.broadcast %10 : vector<64x4xi1> to vector<64x4xi1>
    %12 = arith.xori %8, %11 : vector<64x4xi1>
    %13 = arith.andi %12, %6 : vector<64x4xi1>
    %14 = vector.broadcast %2 : i32 to vector<64x4xi32>
    %15 = arith.addi %4, %14 : vector<64x4xi32>
    %16 = arith.select %13, %15, %4 : vector<64x4xi1>, vector<64x4xi32>
    %17 = tpu.iota {dimensions = array<i32: 1>} : vector<64x4xi32>
    %18 = arith.cmpi eq, %16, %17 : vector<64x4xi32>
    %19 = arith.extui %18 : vector<64x4xi1> to vector<64x4xi32>
    %20 = arith.sitofp %19 : vector<64x4xi32> to vector<64x4xf32>
    %21 = tpu.iota {dimensions = array<i32: 1>} : vector<4x64xi32>
    %c4_i32_3 = arith.constant 4 : i32
    %c0_i32_4 = arith.constant 0 : i32
    %22 = arith.cmpi eq, %c4_i32_3, %c0_i32_4 : i32
    %c1_i32_5 = arith.constant 1 : i32
    %23 = arith.select %22, %c1_i32_5, %c4_i32_3 : i32
    %24 = vector.broadcast %23 : i32 to vector<4x64xi32>
    %25 = arith.remsi %21, %24 : vector<4x64xi32>
    %c0_i32_6 = arith.constant 0 : i32
    %26 = vector.broadcast %c0_i32_6 : i32 to vector<4x64xi32>
    %27 = arith.cmpi ne, %25, %26 : vector<4x64xi32>
    %c0_i32_7 = arith.constant 0 : i32
    %28 = vector.broadcast %c0_i32_7 : i32 to vector<4x64xi32>
    %29 = arith.cmpi slt, %25, %28 : vector<4x64xi32>
    %c0_i32_8 = arith.constant 0 : i32
    %30 = arith.cmpi slt, %23, %c0_i32_8 : i32
    %31 = vector.broadcast %30 : i1 to vector<4x64xi1>
    %32 = vector.broadcast %31 : vector<4x64xi1> to vector<4x64xi1>
    %33 = arith.xori %29, %32 : vector<4x64xi1>
    %34 = arith.andi %33, %27 : vector<4x64xi1>
    %35 = vector.broadcast %23 : i32 to vector<4x64xi32>
    %36 = arith.addi %25, %35 : vector<4x64xi32>
    %37 = arith.select %34, %36, %25 : vector<4x64xi1>, vector<4x64xi32>
    %38 = tpu.iota {dimensions = array<i32: 0>} : vector<4x64xi32>
    %39 = arith.cmpi eq, %37, %38 : vector<4x64xi32>
    %40 = arith.extui %39 : vector<4x64xi1> to vector<4x64xi32>
    %41 = arith.sitofp %40 : vector<4x64xi32> to vector<4x64xf32>
    %cst = arith.constant 0.000000e+00 : f32
    %42 = vector.broadcast %cst : f32 to vector<2x1x64xf32>
    %c0 = arith.constant 0 : index
    %c0_9 = arith.constant 0 : index
    %c0_10 = arith.constant 0 : index
    %43 = vector.load %arg8[%c0, %c0_9, %c0_10] : memref<2x18x64xf32, #tpu.memory_space<vmem>>, vector<2x1x64xf32>
    tpu.vector_store %arg8[%c0, %c0_9, %c0_10], %42 {strides = array<i32>} : memref<2x18x64xf32, #tpu.memory_space<vmem>>, vector<2x1x64xf32>,
    %c0_11 = arith.constant 0 : index
    %c17 = arith.constant 17 : index
    %c0_12 = arith.constant 0 : index
    %44 = vector.load %arg8[%c0_11, %c17, %c0_12] : memref<2x18x64xf32, #tpu.memory_space<vmem>>, vector<2x1x64xf32>
    tpu.vector_store %arg8[%c0_11, %c17, %c0_12], %42 {strides = array<i32>} : memref<2x18x64xf32, #tpu.memory_space<vmem>>, vector<2x1x64xf32>,
    %c0_13 = arith.constant 0 : index
    %c0_14 = arith.constant 0 : index
    %c0_15 = arith.constant 0 : index
    %45 = vector.load %arg0[%c0_13, %c0_14, %c0_15] : memref<2x16x64xf32, #tpu.memory_space<vmem>>, vector<2x16x64xf32>
    %c0_16 = arith.constant 0 : index
    %c1 = arith.constant 1 : index
    %c0_17 = arith.constant 0 : index
    %46 = vector.load %arg8[%c0_16, %c1, %c0_17] : memref<2x18x64xf32, #tpu.memory_space<vmem>>, vector<2x16x64xf32>
    tpu.vector_store %arg8[%c0_16, %c1, %c0_17], %45 {strides = array<i32>} : memref<2x18x64xf32, #tpu.memory_space<vmem>>, vector<2x16x64xf32>,
    %cst_18 = arith.constant 0.000000e+00 : f32
    %47 = vector.broadcast %cst_18 : f32 to vector<32x64xf32>
    %c0_19 = arith.constant 0 : index
    %c0_20 = arith.constant 0 : index
    %c0_21 = arith.constant 0 : index
    %48 = vector.load %arg8[%c0_19, %c0_20, %c0_21] : memref<2x18x64xf32, #tpu.memory_space<vmem>>, vector<2x16x64xf32>
    %49 = vector.shape_cast %48 : vector<2x16x64xf32> to vector<32x64xf32>
    %c0_22 = arith.constant 0 : index
    %c0_23 = arith.constant 0 : index
    %c0_24 = arith.constant 0 : index
    %50 = vector.load %arg1[%c0_22, %c0_23, %c0_24] : memref<3x64x64xf32, #tpu.memory_space<vmem>>, vector<1x64x64xf32>
    %51 = vector.shape_cast %50 : vector<1x64x64xf32> to vector<64x64xf32>
    %cst_25 = arith.constant dense<0.000000e+00> : vector<32x64xf32>
    %52 = tpu.matmul %49, %51, %cst_25 {dimension_numbers = #tpu.dot_dimension_numbers<[1], [0], [0], [1], [0, 0, 1, 1], [], []>} : vector<32x64xf32>, vector<64x64xf32>, vector<32x64xf32> -> vector<32x64xf32>
    %53 = arith.addf %47, %52 : vector<32x64xf32>
    %c0_26 = arith.constant 0 : index
    %c1_27 = arith.constant 1 : index
    %c0_28 = arith.constant 0 : index
    %54 = vector.load %arg8[%c0_26, %c1_27, %c0_28] : memref<2x18x64xf32, #tpu.memory_space<vmem>>, vector<2x16x64xf32>
    %55 = vector.shape_cast %54 : vector<2x16x64xf32> to vector<32x64xf32>
    %c1_29 = arith.constant 1 : index
    %c0_30 = arith.constant 0 : index
    %c0_31 = arith.constant 0 : index
    %56 = vector.load %arg1[%c1_29, %c0_30, %c0_31] : memref<3x64x64xf32, #tpu.memory_space<vmem>>, vector<1x64x64xf32>
    %57 = vector.shape_cast %56 : vector<1x64x64xf32> to vector<64x64xf32>
    %cst_32 = arith.constant dense<0.000000e+00> : vector<32x64xf32>
    %58 = tpu.matmul %55, %57, %cst_32 {dimension_numbers = #tpu.dot_dimension_numbers<[1], [0], [0], [1], [0, 0, 1, 1], [], []>} : vector<32x64xf32>, vector<64x64xf32>, vector<32x64xf32> -> vector<32x64xf32>
    %59 = arith.addf %53, %58 : vector<32x64xf32>
    %c0_33 = arith.constant 0 : index
    %c2 = arith.constant 2 : index
    %c0_34 = arith.constant 0 : index
    %60 = vector.load %arg8[%c0_33, %c2, %c0_34] : memref<2x18x64xf32, #tpu.memory_space<vmem>>, vector<2x16x64xf32>
    %61 = vector.shape_cast %60 : vector<2x16x64xf32> to vector<32x64xf32>
    %c2_35 = arith.constant 2 : index
    %c0_36 = arith.constant 0 : index
    %c0_37 = arith.constant 0 : index
    %62 = vector.load %arg1[%c2_35, %c0_36, %c0_37] : memref<3x64x64xf32, #tpu.memory_space<vmem>>, vector<1x64x64xf32>
    %63 = vector.shape_cast %62 : vector<1x64x64xf32> to vector<64x64xf32>
    %cst_38 = arith.constant dense<0.000000e+00> : vector<32x64xf32>
    %64 = tpu.matmul %61, %63, %cst_38 {dimension_numbers = #tpu.dot_dimension_numbers<[1], [0], [0], [1], [0, 0, 1, 1], [], []>} : vector<32x64xf32>, vector<64x64xf32>, vector<32x64xf32> -> vector<32x64xf32>
    %65 = arith.addf %59, %64 : vector<32x64xf32>
    %cst_39 = arith.constant dense<0.000000e+00> : vector<64xf32>
    %66 = vector.multi_reduction <add>, %65, %cst_39 [0] : vector<32x64xf32> to vector<64xf32>
    %67 = vector.shape_cast %66 : vector<64xf32> to vector<1x64xf32>
    %68 = arith.mulf %65, %65 : vector<32x64xf32>
    %cst_40 = arith.constant dense<0.000000e+00> : vector<64xf32>
    %69 = vector.multi_reduction <add>, %68, %cst_40 [0] : vector<32x64xf32> to vector<64xf32>
    %70 = vector.shape_cast %69 : vector<64xf32> to vector<1x64xf32>
    %cst_41 = arith.constant dense<0.000000e+00> : vector<1x4xf32>
    %71 = tpu.matmul %67, %20, %cst_41 {dimension_numbers = #tpu.dot_dimension_numbers<[1], [0], [0], [1], [0, 0, 1, 1], [], []>} : vector<1x64xf32>, vector<64x4xf32>, vector<1x4xf32> -> vector<1x4xf32>
    %cst_42 = arith.constant dense<0.000000e+00> : vector<1x4xf32>
    %72 = tpu.matmul %70, %20, %cst_42 {dimension_numbers = #tpu.dot_dimension_numbers<[1], [0], [0], [1], [0, 0, 1, 1], [], []>} : vector<1x64xf32>, vector<64x4xf32>, vector<1x4xf32> -> vector<1x4xf32>
    %cst_43 = arith.constant 0.001953125 : f32
    %73 = vector.broadcast %cst_43 : f32 to vector<1x4xf32>
    %74 = arith.mulf %71, %73 : vector<1x4xf32>
    %cst_44 = arith.constant 0.001953125 : f32
    %75 = vector.broadcast %cst_44 : f32 to vector<1x4xf32>
    %76 = arith.mulf %72, %75 : vector<1x4xf32>
    %77 = arith.mulf %74, %74 : vector<1x4xf32>
    %78 = arith.subf %76, %77 : vector<1x4xf32>
    %c0_45 = arith.constant 0 : index
    %c0_46 = arith.constant 0 : index
    %79 = vector.load %arg3[%c0_45, %c0_46] : memref<1x4xf32, #tpu.memory_space<vmem>>, vector<1x4xf32>
    %cst_47 = arith.constant 9.99999974E-6 : f32
    %80 = vector.broadcast %cst_47 : f32 to vector<1x4xf32>
    %81 = arith.addf %78, %80 : vector<1x4xf32>
    %82 = math.rsqrt %81 : vector<1x4xf32>
    %83 = arith.mulf %79, %82 : vector<1x4xf32>
    %c0_48 = arith.constant 0 : index
    %c0_49 = arith.constant 0 : index
    %84 = vector.load %arg4[%c0_48, %c0_49] : memref<1x4xf32, #tpu.memory_space<vmem>>, vector<1x4xf32>
    %85 = arith.mulf %74, %83 : vector<1x4xf32>
    %86 = arith.subf %84, %85 : vector<1x4xf32>
    %cst_50 = arith.constant dense<0.000000e+00> : vector<1x64xf32>
    %87 = tpu.matmul %83, %41, %cst_50 {dimension_numbers = #tpu.dot_dimension_numbers<[1], [0], [0], [1], [0, 0, 1, 1], [], []>} : vector<1x4xf32>, vector<4x64xf32>, vector<1x64xf32> -> vector<1x64xf32>
    %cst_51 = arith.constant dense<0.000000e+00> : vector<1x64xf32>
    %88 = tpu.matmul %86, %41, %cst_51 {dimension_numbers = #tpu.dot_dimension_numbers<[1], [0], [0], [1], [0, 0, 1, 1], [], []>} : vector<1x4xf32>, vector<4x64xf32>, vector<1x64xf32> -> vector<1x64xf32>
    %89 = vector.broadcast %87 : vector<1x64xf32> to vector<32x64xf32>
    %90 = arith.mulf %65, %89 : vector<32x64xf32>
    %91 = vector.broadcast %88 : vector<1x64xf32> to vector<32x64xf32>
    %92 = arith.addf %90, %91 : vector<32x64xf32>
    %cst_52 = arith.constant 0.000000e+00 : f32
    %93 = vector.broadcast %cst_52 : f32 to vector<32x64xf32>
    %94 = arith.maximumf %92, %93 : vector<32x64xf32>
    %95 = vector.shape_cast %94 : vector<32x64xf32> to vector<2x16x64xf32>
    %c0_53 = arith.constant 0 : index
    %c1_54 = arith.constant 1 : index
    %c0_55 = arith.constant 0 : index
    %96 = vector.load %arg8[%c0_53, %c1_54, %c0_55] : memref<2x18x64xf32, #tpu.memory_space<vmem>>, vector<2x16x64xf32>
    tpu.vector_store %arg8[%c0_53, %c1_54, %c0_55], %95 {strides = array<i32>} : memref<2x18x64xf32, #tpu.memory_space<vmem>>, vector<2x16x64xf32>,
    %cst_56 = arith.constant 0.000000e+00 : f32
    %97 = vector.broadcast %cst_56 : f32 to vector<32x64xf32>
    %c0_57 = arith.constant 0 : index
    %c0_58 = arith.constant 0 : index
    %c0_59 = arith.constant 0 : index
    %98 = vector.load %arg8[%c0_57, %c0_58, %c0_59] : memref<2x18x64xf32, #tpu.memory_space<vmem>>, vector<2x16x64xf32>
    %99 = vector.shape_cast %98 : vector<2x16x64xf32> to vector<32x64xf32>
    %c0_60 = arith.constant 0 : index
    %c0_61 = arith.constant 0 : index
    %c0_62 = arith.constant 0 : index
    %100 = vector.load %arg2[%c0_60, %c0_61, %c0_62] : memref<3x64x64xf32, #tpu.memory_space<vmem>>, vector<1x64x64xf32>
    %101 = vector.shape_cast %100 : vector<1x64x64xf32> to vector<64x64xf32>
    %cst_63 = arith.constant dense<0.000000e+00> : vector<32x64xf32>
    %102 = tpu.matmul %99, %101, %cst_63 {dimension_numbers = #tpu.dot_dimension_numbers<[1], [0], [0], [1], [0, 0, 1, 1], [], []>} : vector<32x64xf32>, vector<64x64xf32>, vector<32x64xf32> -> vector<32x64xf32>
    %103 = arith.addf %97, %102 : vector<32x64xf32>
    %c0_64 = arith.constant 0 : index
    %c1_65 = arith.constant 1 : index
    %c0_66 = arith.constant 0 : index
    %104 = vector.load %arg8[%c0_64, %c1_65, %c0_66] : memref<2x18x64xf32, #tpu.memory_space<vmem>>, vector<2x16x64xf32>
    %105 = vector.shape_cast %104 : vector<2x16x64xf32> to vector<32x64xf32>
    %c1_67 = arith.constant 1 : index
    %c0_68 = arith.constant 0 : index
    %c0_69 = arith.constant 0 : index
    %106 = vector.load %arg2[%c1_67, %c0_68, %c0_69] : memref<3x64x64xf32, #tpu.memory_space<vmem>>, vector<1x64x64xf32>
    %107 = vector.shape_cast %106 : vector<1x64x64xf32> to vector<64x64xf32>
    %cst_70 = arith.constant dense<0.000000e+00> : vector<32x64xf32>
    %108 = tpu.matmul %105, %107, %cst_70 {dimension_numbers = #tpu.dot_dimension_numbers<[1], [0], [0], [1], [0, 0, 1, 1], [], []>} : vector<32x64xf32>, vector<64x64xf32>, vector<32x64xf32> -> vector<32x64xf32>
    %109 = arith.addf %103, %108 : vector<32x64xf32>
    %c0_71 = arith.constant 0 : index
    %c2_72 = arith.constant 2 : index
    %c0_73 = arith.constant 0 : index
    %110 = vector.load %arg8[%c0_71, %c2_72, %c0_73] : memref<2x18x64xf32, #tpu.memory_space<vmem>>, vector<2x16x64xf32>
    %111 = vector.shape_cast %110 : vector<2x16x64xf32> to vector<32x64xf32>
    %c2_74 = arith.constant 2 : index
    %c0_75 = arith.constant 0 : index
    %c0_76 = arith.constant 0 : index
    %112 = vector.load %arg2[%c2_74, %c0_75, %c0_76] : memref<3x64x64xf32, #tpu.memory_space<vmem>>, vector<1x64x64xf32>
    %113 = vector.shape_cast %112 : vector<1x64x64xf32> to vector<64x64xf32>
    %cst_77 = arith.constant dense<0.000000e+00> : vector<32x64xf32>
    %114 = tpu.matmul %111, %113, %cst_77 {dimension_numbers = #tpu.dot_dimension_numbers<[1], [0], [0], [1], [0, 0, 1, 1], [], []>} : vector<32x64xf32>, vector<64x64xf32>, vector<32x64xf32> -> vector<32x64xf32>
    %115 = arith.addf %109, %114 : vector<32x64xf32>
    %cst_78 = arith.constant dense<0.000000e+00> : vector<64xf32>
    %116 = vector.multi_reduction <add>, %115, %cst_78 [0] : vector<32x64xf32> to vector<64xf32>
    %117 = vector.shape_cast %116 : vector<64xf32> to vector<1x64xf32>
    %118 = arith.mulf %115, %115 : vector<32x64xf32>
    %cst_79 = arith.constant dense<0.000000e+00> : vector<64xf32>
    %119 = vector.multi_reduction <add>, %118, %cst_79 [0] : vector<32x64xf32> to vector<64xf32>
    %120 = vector.shape_cast %119 : vector<64xf32> to vector<1x64xf32>
    %cst_80 = arith.constant dense<0.000000e+00> : vector<1x4xf32>
    %121 = tpu.matmul %117, %20, %cst_80 {dimension_numbers = #tpu.dot_dimension_numbers<[1], [0], [0], [1], [0, 0, 1, 1], [], []>} : vector<1x64xf32>, vector<64x4xf32>, vector<1x4xf32> -> vector<1x4xf32>
    %cst_81 = arith.constant dense<0.000000e+00> : vector<1x4xf32>
    %122 = tpu.matmul %120, %20, %cst_81 {dimension_numbers = #tpu.dot_dimension_numbers<[1], [0], [0], [1], [0, 0, 1, 1], [], []>} : vector<1x64xf32>, vector<64x4xf32>, vector<1x4xf32> -> vector<1x4xf32>
    %cst_82 = arith.constant 0.001953125 : f32
    %123 = vector.broadcast %cst_82 : f32 to vector<1x4xf32>
    %124 = arith.mulf %121, %123 : vector<1x4xf32>
    %cst_83 = arith.constant 0.001953125 : f32
    %125 = vector.broadcast %cst_83 : f32 to vector<1x4xf32>
    %126 = arith.mulf %122, %125 : vector<1x4xf32>
    %127 = arith.mulf %124, %124 : vector<1x4xf32>
    %128 = arith.subf %126, %127 : vector<1x4xf32>
    %c0_84 = arith.constant 0 : index
    %c0_85 = arith.constant 0 : index
    %129 = vector.load %arg5[%c0_84, %c0_85] : memref<1x4xf32, #tpu.memory_space<vmem>>, vector<1x4xf32>
    %cst_86 = arith.constant 9.99999974E-6 : f32
    %130 = vector.broadcast %cst_86 : f32 to vector<1x4xf32>
    %131 = arith.addf %128, %130 : vector<1x4xf32>
    %132 = math.rsqrt %131 : vector<1x4xf32>
    %133 = arith.mulf %129, %132 : vector<1x4xf32>
    %c0_87 = arith.constant 0 : index
    %c0_88 = arith.constant 0 : index
    %134 = vector.load %arg6[%c0_87, %c0_88] : memref<1x4xf32, #tpu.memory_space<vmem>>, vector<1x4xf32>
    %135 = arith.mulf %124, %133 : vector<1x4xf32>
    %136 = arith.subf %134, %135 : vector<1x4xf32>
    %cst_89 = arith.constant dense<0.000000e+00> : vector<1x64xf32>
    %137 = tpu.matmul %133, %41, %cst_89 {dimension_numbers = #tpu.dot_dimension_numbers<[1], [0], [0], [1], [0, 0, 1, 1], [], []>} : vector<1x4xf32>, vector<4x64xf32>, vector<1x64xf32> -> vector<1x64xf32>
    %cst_90 = arith.constant dense<0.000000e+00> : vector<1x64xf32>
    %138 = tpu.matmul %136, %41, %cst_90 {dimension_numbers = #tpu.dot_dimension_numbers<[1], [0], [0], [1], [0, 0, 1, 1], [], []>} : vector<1x4xf32>, vector<4x64xf32>, vector<1x64xf32> -> vector<1x64xf32>
    %139 = vector.broadcast %137 : vector<1x64xf32> to vector<32x64xf32>
    %140 = arith.mulf %115, %139 : vector<32x64xf32>
    %141 = vector.broadcast %138 : vector<1x64xf32> to vector<32x64xf32>
    %142 = arith.addf %140, %141 : vector<32x64xf32>
    %c0_91 = arith.constant 0 : index
    %c0_92 = arith.constant 0 : index
    %c0_93 = arith.constant 0 : index
    %143 = vector.load %arg0[%c0_91, %c0_92, %c0_93] : memref<2x16x64xf32, #tpu.memory_space<vmem>>, vector<2x16x64xf32>
    %144 = vector.shape_cast %143 : vector<2x16x64xf32> to vector<32x64xf32>
    %145 = arith.addf %142, %144 : vector<32x64xf32>
    %cst_94 = arith.constant 0.000000e+00 : f32
    %146 = vector.broadcast %cst_94 : f32 to vector<32x64xf32>
    %147 = arith.maximumf %145, %146 : vector<32x64xf32>
    %c0_95 = arith.constant 0 : index
    %c0_96 = arith.constant 0 : index
    %148 = vector.load %arg7[%c0_95, %c0_96] : memref<32x64xf32, #tpu.memory_space<vmem>>, vector<32x64xf32>
    tpu.vector_store %arg7[%c0_95, %c0_96], %147 {strides = array<i32>} : memref<32x64xf32, #tpu.memory_space<vmem>>, vector<32x64xf32>,
    return
  }
}

</mosaic_0001>

<llo_original>
// kernel: basic_block_nchw.1
$region0: #{basic_block_nchw.1}
  #allocation0 [shape = 'u32[]', space=smem, size = 0x4, offset = 0x4, fixed_abs, tag = 'smem constant byte address 0x4 - core index']
  #allocation1 [shape = 'u32[144,128]{1,0:T(1,128)}', space=vmem, size = 0x12000, scoped, tag = 'internal scratch']
  #allocation2 [shape = 'f32[2,18,64]{2,1,0:T(8,128)}', space=vmem, size = 0x6000, scoped, tag = 'scratch operand']
  %s0 = inlined_call_operand.vmem [shape: f32[2,16,64], index: 0, kind: input, shape index: {}]
  %s1 = inlined_call_operand.vmem [shape: f32[3,64,64], index: 1, kind: input, shape index: {}]
  %s2 = inlined_call_operand.vmem [shape: f32[3,64,64], index: 2, kind: input, shape index: {}]
  %s3 = inlined_call_operand.vmem [shape: f32[1,4], index: 3, kind: input, shape index: {}]
  %s4 = inlined_call_operand.vmem [shape: f32[1,4], index: 4, kind: input, shape index: {}]
  %s5 = inlined_call_operand.vmem [shape: f32[1,4], index: 5, kind: input, shape index: {}]
  %s6 = inlined_call_operand.vmem [shape: f32[1,4], index: 6, kind: input, shape index: {}]
  %s7 = inlined_call_operand.vmem [shape: f32[32,64], index: 7, kind: output, shape index: {}]
  %s8 = sld [smem:[#allocation0]]
  $region38: #{basic_block_nchw.1} parent=0
    _
  %s10 = ssub.s32 1, %s8
  %s11 = scalar_select 0, %s10, %s8
  // Predicated region
  $region2: #{basic_block_nchw.1} parent=0 // pred_check
    _
  $region3: #{basic_block_nchw.1} parent=0 // pred_check_branch
    %13 = sbr.rel (0) target = $region5
  $region4: #{basic_block_nchw.1} parent=0 // pred_region
    _
  $region5: #{basic_block_nchw.1} parent=0 // pred_fallthru
    _
  // Predicated region
  $region6: #{basic_block_nchw.1} parent=0 // pred_check
    _
  $region7: #{basic_block_nchw.1} parent=0 // pred_check_branch
    %15 = sbr.rel (0) target = $region9
  $region8: #{basic_block_nchw.1} parent=0 // pred_region
    _
  $region9: #{basic_block_nchw.1} parent=0 // pred_fallthru
    _
  // Predicated region
  $region10: #{basic_block_nchw.1} parent=0 // pred_check
    _
  $region11: #{basic_block_nchw.1} parent=0 // pred_check_branch
    %17 = sbr.rel (0) target = $region13
  $region12: #{basic_block_nchw.1} parent=0 // pred_region
    _
  $region13: #{basic_block_nchw.1} parent=0 // pred_fallthru
    _
  // Predicated region
  $region14: #{basic_block_nchw.1} parent=0 // pred_check
    _
  $region15: #{basic_block_nchw.1} parent=0 // pred_check_branch
    %19 = sbr.rel (0) target = $region17
  $region16: #{basic_block_nchw.1} parent=0 // pred_region
    _
  $region17: #{basic_block_nchw.1} parent=0 // pred_fallthru
    _
  // Predicated region
  $region18: #{basic_block_nchw.1} parent=0 // pred_check
    _
  $region19: #{basic_block_nchw.1} parent=0 // pred_check_branch
    %21 = sbr.rel (0) target = $region21
  $region20: #{basic_block_nchw.1} parent=0 // pred_region
    _
  $region21: #{basic_block_nchw.1} parent=0 // pred_fallthru
    _
  // Predicated region
  $region22: #{basic_block_nchw.1} parent=0 // pred_check
    _
  $region23: #{basic_block_nchw.1} parent=0 // pred_check_branch
    %23 = sbr.rel (0) target = $region25
  $region24: #{basic_block_nchw.1} parent=0 // pred_region
    _
  $region25: #{basic_block_nchw.1} parent=0 // pred_fallthru
    _
  // Predicated region
  $region26: #{basic_block_nchw.1} parent=0 // pred_check
    _
  $region27: #{basic_block_nchw.1} parent=0 // pred_check_branch
    %25 = sbr.rel (0) target = $region29
  $region28: #{basic_block_nchw.1} parent=0 // pred_region
    _
  $region29: #{basic_block_nchw.1} parent=0 // pred_fallthru
    _
  %v26 = vlaneseq
  %v27 = vshrl.u32 %v26, 7
  %v28 = vadd.s32 %v27, 8
  %v29 = vadd.s32 %v27, 16
  %v30 = vadd.s32 %v27, 24
  %v31 = vadd.s32 %v27, 32
  %v32 = vadd.s32 %v27, 40
  %v33 = vadd.s32 %v27, 48
  %v34 = vadd.s32 %v27, 56
  %vm35 = vcmp.lt.s32.totalorder %v27, 0
  %v36 = vsub.s32 0, %v27
  %v37 = vsel %vm35, %v36, %v27
  %v38 = vshrl.u32 %v37, 2
  %v39 = vand.u32 %v37, 3
  %v40 = vsub.s32 0, %v39
  %v41 = vsel %vm35, %v40, %v39
  %vm42 = vcmp.lt.s32.totalorder %v28, 0
  %v43 = vsub.s32 0, %v28
  %v44 = vsel %vm42, %v43, %v28
  %v45 = vshrl.u32 %v44, 2
  %v46 = vand.u32 %v44, 3
  %v47 = vsub.s32 0, %v46
  %v48 = vsel %vm42, %v47, %v46
  %vm49 = vcmp.lt.s32.totalorder %v29, 0
  %v50 = vsub.s32 0, %v29
  %v51 = vsel %vm49, %v50, %v29
  %v52 = vshrl.u32 %v51, 2
  %v53 = vand.u32 %v51, 3
  %v54 = vsub.s32 0, %v53
  %v55 = vsel %vm49, %v54, %v53
  %vm56 = vcmp.lt.s32.totalorder %v30, 0
  %v57 = vsub.s32 0, %v30
  %v58 = vsel %vm56, %v57, %v30
  %v59 = vshrl.u32 %v58, 2
  %v60 = vand.u32 %v58, 3
  %v61 = vsub.s32 0, %v60
  %v62 = vsel %vm56, %v61, %v60
  %vm63 = vcmp.lt.s32.totalorder %v31, 0
  %v64 = vsub.s32 0, %v31
  %v65 = vsel %vm63, %v64, %v31
  %v66 = vshrl.u32 %v65, 2
  %v67 = vand.u32 %v65, 3
  %v68 = vsub.s32 0, %v67
  %v69 = vsel %vm63, %v68, %v67
  %vm70 = vcmp.lt.s32.totalorder %v32, 0
  %v71 = vsub.s32 0, %v32
  %v72 = vsel %vm70, %v71, %v32
  %v73 = vshrl.u32 %v72, 2
  %v74 = vand.u32 %v72, 3
  %v75 = vsub.s32 0, %v74
  %v76 = vsel %vm70, %v75, %v74
  %vm77 = vcmp.lt.s32.totalorder %v33, 0
  %v78 = vsub.s32 0, %v33
  %v79 = vsel %vm77, %v78, %v33
  %v80 = vshrl.u32 %v79, 2
  %v81 = vand.u32 %v79, 3
  %v82 = vsub.s32 0, %v81
  %v83 = vsel %vm77, %v82, %v81
  %vm84 = vcmp.lt.s32.totalorder %v34, 0
  %v85 = vsub.s32 0, %v34
  %v86 = vsel %vm84, %v85, %v34
  %v87 = vshrl.u32 %v86, 2
  %v88 = vand.u32 %v86, 3
  %v89 = vsub.s32 0, %v88
  %v90 = vsel %vm84, %v89, %v88
  %vm91 = vcmp.ne.s32.totalorder %v41, 0
  %vm92 = vcmp.ne.s32.totalorder %v48, 0
  %vm93 = vcmp.ne.s32.totalorder %v55, 0
  %vm94 = vcmp.ne.s32.totalorder %v62, 0
  %vm95 = vcmp.ne.s32.totalorder %v69, 0
  %vm96 = vcmp.ne.s32.totalorder %v76, 0
  %vm97 = vcmp.ne.s32.totalorder %v83, 0
  %vm98 = vcmp.ne.s32.totalorder %v90, 0
  %vm99 = vcmp.lt.s32.totalorder %v41, 0
  %vm100 = vcmp.lt.s32.totalorder %v48, 0
  %vm101 = vcmp.lt.s32.totalorder %v55, 0
  %vm102 = vcmp.lt.s32.totalorder %v62, 0
  %vm103 = vcmp.lt.s32.totalorder %v69, 0
  %vm104 = vcmp.lt.s32.totalorder %v76, 0
  %vm105 = vcmp.lt.s32.totalorder %v83, 0
  %vm106 = vcmp.lt.s32.totalorder %v90, 0
  %vm107 = vmand %vm99, %vm91
  %vm108 = vmand %vm100, %vm92
  %vm109 = vmand %vm101, %vm93
  %vm110 = vmand %vm102, %vm94
  %vm111 = vmand %vm103, %vm95
  %vm112 = vmand %vm104, %vm96
  %vm113 = vmand %vm105, %vm97
  %vm114 = vmand %vm106, %vm98
  %v115 = vadd.s32 %v41, 4
  %v116 = vadd.s32 %v48, 4
  %v117 = vadd.s32 %v55, 4
  %v118 = vadd.s32 %v62, 4
  %v119 = vadd.s32 %v69, 4
  %v120 = vadd.s32 %v76, 4
  %v121 = vadd.s32 %v83, 4
  %v122 = vadd.s32 %v90, 4
  %v123 = vsel %vm107, %v115, %v41
  %v124 = vsel %vm108, %v116, %v48
  %v125 = vsel %vm109, %v117, %v55
  %v126 = vsel %vm110, %v118, %v62
  %v127 = vsel %vm111, %v119, %v69
  %v128 = vsel %vm112, %v120, %v76
  %v129 = vsel %vm113, %v121, %v83
  %v130 = vsel %vm114, %v122, %v90
  %v131 = vlaneseq
  %v132 = vand.u32 %v131, 127
  %vm133 = vcmp.eq.s32.totalorder %v123, %v132
  %vm134 = vcmp.eq.s32.totalorder %v124, %v132
  %vm135 = vcmp.eq.s32.totalorder %v125, %v132
  %vm136 = vcmp.eq.s32.totalorder %v126, %v132
  %vm137 = vcmp.eq.s32.totalorder %v127, %v132
  %vm138 = vcmp.eq.s32.totalorder %v128, %v132
  %vm139 = vcmp.eq.s32.totalorder %v129, %v132
  %vm140 = vcmp.eq.s32.totalorder %v130, %v132
  %v141 = vsel %vm133, 1, 0
  %v142 = vsel %vm134, 1, 0
  %v143 = vsel %vm135, 1, 0
  %v144 = vsel %vm136, 1, 0
  %v145 = vsel %vm137, 1, 0
  %v146 = vsel %vm138, 1, 0
  %v147 = vsel %vm139, 1, 0
  %v148 = vsel %vm140, 1, 0
  %v149 = vcvt.s32.f32 %v141
  %v150 = vcvt.s32.f32 %v142
  %v151 = vcvt.s32.f32 %v143
  %v152 = vcvt.s32.f32 %v144
  %v153 = vcvt.s32.f32 %v145
  %v154 = vcvt.s32.f32 %v146
  %v155 = vcvt.s32.f32 %v147
  %v156 = vcvt.s32.f32 %v148
  %vm157 = vcmp.lt.s32.totalorder %v132, 0
  %v158 = vsub.s32 0, %v132
  %v159 = vsel %vm157, %v158, %v132
  %v160 = vshrl.u32 %v159, 2
  %v161 = vand.u32 %v159, 3
  %v162 = vsub.s32 0, %v161
  %v163 = vsel %vm157, %v162, %v161
  %vm164 = vcmp.ne.s32.totalorder %v163, 0
  %vm165 = vcmp.lt.s32.totalorder %v163, 0
  %vm166 = vmand %vm165, %vm164
  %v167 = vadd.s32 %v163, 4
  %v168 = vsel %vm166, %v167, %v163
  %vm169 = vcmp.eq.s32.totalorder %v168, %v27
  %v170 = vsel %vm169, 1, 0
  %v171 = vcvt.s32.f32 %v170
  %vm172 = vcmask 516096
  %173 = vst.msk [vmem:[#allocation2] sm:$0x1] %vm172, 0.0
  %174 = vst.msk [vmem:[#allocation2 + $0x18] sm:$0x1] %vm172, 0.0
  %175 = vst.msk [vmem:[#allocation2 + $0x11] sm:$0x1] %vm172, 0.0
  %176 = vst.msk [vmem:[#allocation2 + $0x29] sm:$0x1] %vm172, 0.0
  %v177 = vld [vmem:[%s0] sm:$0xff]
  %v178 = vld [vmem:[%s0 + $0x8] sm:$0xff]
  %v179 = vld [vmem:[%s0 + $0x10] sm:$0xff]
  %v180 = vld [vmem:[%s0 + $0x18] sm:$0xff]
  %vm181 = vcmask 523264
  %182 = vst.msk [vmem:[#allocation2 + $0x1] sm:$0xff] %vm181, %v177
  %183 = vst.msk [vmem:[#allocation2 + $0x9] sm:$0xff] %vm181, %v178
  %184 = vst.msk [vmem:[#allocation2 + $0x19] sm:$0xff] %vm181, %v179
  %185 = vst.msk [vmem:[#allocation2 + $0x21] sm:$0xff] %vm181, %v180
  %v186 = vld [vmem:[#allocation2] sm:$0xff]
  %v187 = vld [vmem:[#allocation2 + $0x8] sm:$0xff]
  %v188 = vld [vmem:[#allocation2 + $0x18] sm:$0xff]
  %v189 = vld [vmem:[#allocation2 + $0x20] sm:$0xff]
  %v190 = vld [vmem:[%s1] sm:$0xff]
  %v191 = vld [vmem:[%s1 + $0x8] sm:$0xff]
  %v192 = vld [vmem:[%s1 + $0x10] sm:$0xff]
  %v193 = vld [vmem:[%s1 + $0x18] sm:$0xff]
  %v194 = vld [vmem:[%s1 + $0x20] sm:$0xff]
  %v195 = vld [vmem:[%s1 + $0x28] sm:$0xff]
  %v196 = vld [vmem:[%s1 + $0x30] sm:$0xff]
  %v197 = vld [vmem:[%s1 + $0x38] sm:$0xff]
  %v198 = vld [vmem:[#allocation2 + $0x1] sm:$0xff]
  %v199 = vld [vmem:[#allocation2 + $0x9] sm:$0xff]
  %v200 = vld [vmem:[#allocation2 + $0x19] sm:$0xff]
  %v201 = vld [vmem:[#allocation2 + $0x21] sm:$0xff]
  %s202 = scalar_lea.vmem %s1, 64
  %v203 = vld [vmem:[%s202] sm:$0xff]
  %v204 = vld [vmem:[%s202 + $0x8] sm:$0xff]
  %v205 = vld [vmem:[%s202 + $0x10] sm:$0xff]
  %v206 = vld [vmem:[%s202 + $0x18] sm:$0xff]
  %v207 = vld [vmem:[%s202 + $0x20] sm:$0xff]
  %v208 = vld [vmem:[%s202 + $0x28] sm:$0xff]
  %v209 = vld [vmem:[%s202 + $0x30] sm:$0xff]
  %v210 = vld [vmem:[%s202 + $0x38] sm:$0xff]
  %v212 = vsel %vm181, %v198, 0
  %v215 = vsel %vm181, %v199, 0
  %v218 = vsel %vm181, %v200, 0
  %v221 = vsel %vm181, %v201, 0
  %223 = vmatprep.subr.mxu0 0.0
  %224 = vmatpush1.msra.mxu0 %v203
  %225 = vmatprep.subr.mxu0 0.0
  %226 = vmatpush1.msra.mxu0 %v204
  %227 = vmatprep.subr.mxu0 0.0
  %228 = vmatpush1.msra.mxu0 %v205
  %229 = vmatprep.subr.mxu0 0.0
  %230 = vmatpush1.msra.mxu0 %v206
  %231 = vmatprep.subr.mxu0 0.0
  %232 = vmatpush1.msra.mxu0 %v207
  %233 = vmatprep.subr.mxu0 0.0
  %234 = vmatpush1.msra.mxu0 %v208
  %235 = vmatprep.subr.mxu0 0.0
  %236 = vmatpush1.msra.mxu0 %v209
  %237 = vmatprep.subr.mxu0 0.0
  %238 = vmatpush1.msra.mxu0 %v210
  %239 = vmatprep.subr.mxu0 0.0
  %240 = vmatpush1.msra.mxu0 0.0
  %241 = vmatprep.subr.mxu0 0.0
  %242 = vmatpush1.msra.mxu0 0.0
  %243 = vmatprep.subr.mxu0 0.0
  %244 = vmatpush1.msra.mxu0 0.0
  %245 = vmatprep.subr.mxu0 0.0
  %246 = vmatpush1.msra.mxu0 0.0
  %247 = vmatprep.subr.mxu0 0.0
  %248 = vmatpush1.msra.mxu0 0.0
  %249 = vmatprep.subr.mxu0 0.0
  %250 = vmatpush1.msra.mxu0 0.0
  %251 = vmatprep.subr.mxu0 0.0
  %252 = vmatpush1.msra.mxu0 0.0
  %253 = vmatprep.subr.mxu0 0.0
  %254 = vmatpush1.msra.mxu0 0.0
  %255 = vmatprep.subr.mxu0 0.0
  %256 = vmatpush1.msra.mxu0 0.0
  %257 = vmatprep.subr.mxu0 0.0
  %258 = vmatpush1.msra.mxu0 0.0
  %259 = vmatprep.subr.mxu0 0.0
  %260 = vmatpush1.msra.mxu0 0.0
  %261 = vmatprep.subr.mxu0 0.0
  %262 = vmatpush1.msra.mxu0 0.0
  %263 = vmatprep.subr.mxu0 0.0
  %264 = vmatpush1.msra.mxu0 0.0
  %265 = vmatprep.subr.mxu0 0.0
  %266 = vmatpush1.msra.mxu0 0.0
  %267 = vmatprep.subr.mxu0 0.0
  %268 = vmatpush1.msra.mxu0 0.0
  %269 = vmatprep.subr.mxu0 0.0
  %270 = vmatpush1.msra.mxu0 0.0
  %271 = vmatprep.subr.mxu0 0.0
  %272 = vmatpush1.msra.mxu0 0.0
  %273 = vmatprep.subr.mxu0 0.0
  %274 = vmatpush1.msra.mxu0 0.0
  %275 = vmatprep.subr.mxu0 0.0
  %276 = vmatpush1.msra.mxu0 0.0
  %277 = vmatprep.subr.mxu0 0.0
  %278 = vmatpush1.msra.mxu0 0.0
  %279 = vmatprep.subr.mxu0 0.0
  %280 = vmatpush1.msra.mxu0 0.0
  %281 = vmatprep.subr.mxu0 0.0
  %282 = vmatpush1.msra.mxu0 0.0
  %283 = vmatprep.subr.mxu0 0.0
  %284 = vmatpush1.msra.mxu0 0.0
  %285 = vmatprep.subr.mxu0 0.0
  %286 = vmatpush1.msra.mxu0 0.0
  %287 = vmatprep.mubr.f32.mxu0 0.0
  %288 = vmatmul.mubr.f32.gmra.mrb[0].mxu0 %v212
  %v289 = vpop.f32.mrb[0].mxu0
  %v290 = vadd.f32 0.0, %v289
  %v291 = vpop.f32.mrb[0].mxu0
  %292 = vmatprep.mubr.f32.mxu0 0.0
  %293 = vmatmul.mubr.f32.gmra.mrb[0].mxu0 %v215
  %v294 = vpop.f32.mrb[0].mxu0
  %v295 = vadd.f32 0.0, %v294
  %v296 = vpop.f32.mrb[0].mxu0
  %297 = vmatprep.mubr.f32.mxu0 0.0
  %298 = vmatmul.mubr.f32.gmra.mrb[0].mxu0 %v218
  %v299 = vpop.f32.mrb[0].mxu0
  %v300 = vadd.f32 0.0, %v299
  %v301 = vpop.f32.mrb[0].mxu0
  %302 = vmatprep.mubr.f32.mxu0 0.0
  %303 = vmatmul.mubr.f32.gmra.mrb[0].mxu0 %v221
  %v304 = vpop.f32.mrb[0].mxu0
  %v305 = vadd.f32 0.0, %v304
  %v306 = vpop.f32.mrb[0].mxu0
  %307 = vdwg.mxu0
  %v309 = vsel %vm181, %v186, 0
  %v312 = vsel %vm181, %v187, 0
  %v315 = vsel %vm181, %v188, 0
  %v318 = vsel %vm181, %v189, 0
  %320 = vmatprep.subr.mxu0 0.0
  %321 = vmatpush1.msra.mxu0 %v190
  %322 = vmatprep.subr.mxu0 0.0
  %323 = vmatpush1.msra.mxu0 %v191
  %324 = vmatprep.subr.mxu0 0.0
  %325 = vmatpush1.msra.mxu0 %v192
  %326 = vmatprep.subr.mxu0 0.0
  %327 = vmatpush1.msra.mxu0 %v193
  %328 = vmatprep.subr.mxu0 0.0
  %329 = vmatpush1.msra.mxu0 %v194
  %330 = vmatprep.subr.mxu0 0.0
  %331 = vmatpush1.msra.mxu0 %v195
  %332 = vmatprep.subr.mxu0 0.0
  %333 = vmatpush1.msra.mxu0 %v196
  %334 = vmatprep.subr.mxu0 0.0
  %335 = vmatpush1.msra.mxu0 %v197
  %336 = vmatprep.subr.mxu0 0.0
  %337 = vmatpush1.msra.mxu0 0.0
  %338 = vmatprep.subr.mxu0 0.0
  %339 = vmatpush1.msra.mxu0 0.0
  %340 = vmatprep.subr.mxu0 0.0
  %341 = vmatpush1.msra.mxu0 0.0
  %342 = vmatprep.subr.mxu0 0.0
  %343 = vmatpush1.msra.mxu0 0.0
  %344 = vmatprep.subr.mxu0 0.0
  %345 = vmatpush1.msra.mxu0 0.0
  %346 = vmatprep.subr.mxu0 0.0
  %347 = vmatpush1.msra.mxu0 0.0
  %348 = vmatprep.subr.mxu0 0.0
  %349 = vmatpush1.msra.mxu0 0.0
  %350 = vmatprep.subr.mxu0 0.0
  %351 = vmatpush1.msra.mxu0 0.0
  %352 = vmatprep.subr.mxu0 0.0
  %353 = vmatpush1.msra.mxu0 0.0
  %354 = vmatprep.subr.mxu0 0.0
  %355 = vmatpush1.msra.mxu0 0.0
  %356 = vmatprep.subr.mxu0 0.0
  %357 = vmatpush1.msra.mxu0 0.0
  %358 = vmatprep.subr.mxu0 0.0
  %359 = vmatpush1.msra.mxu0 0.0
  %360 = vmatprep.subr.mxu0 0.0
  %361 = vmatpush1.msra.mxu0 0.0
  %362 = vmatprep.subr.mxu0 0.0
  %363 = vmatpush1.msra.mxu0 0.0
  %364 = vmatprep.subr.mxu0 0.0
  %365 = vmatpush1.msra.mxu0 0.0
  %366 = vmatprep.subr.mxu0 0.0
  %367 = vmatpush1.msra.mxu0 0.0
  %368 = vmatprep.subr.mxu0 0.0
  %369 = vmatpush1.msra.mxu0 0.0
  %370 = vmatprep.subr.mxu0 0.0
  %371 = vmatpush1.msra.mxu0 0.0
  %372 = vmatprep.subr.mxu0 0.0
  %373 = vmatpush1.msra.mxu0 0.0
  %374 = vmatprep.subr.mxu0 0.0
  %375 = vmatpush1.msra.mxu0 0.0
  %376 = vmatprep.subr.mxu0 0.0
  %377 = vmatpush1.msra.mxu0 0.0
  %378 = vmatprep.subr.mxu0 0.0
  %379 = vmatpush1.msra.mxu0 0.0
  %380 = vmatprep.subr.mxu0 0.0
  %381 = vmatpush1.msra.mxu0 0.0
  %382 = vmatprep.subr.mxu0 0.0
  %383 = vmatpush1.msra.mxu0 0.0
  %384 = vmatprep.mubr.f32.mxu0 0.0
  %385 = vmatmul.mubr.f32.gmra.mrb[0].mxu0 %v309
  %v386 = vpop.f32.mrb[0].mxu0
  %v387 = vadd.f32 %v290, %v386
  %v388 = vpop.f32.mrb[0].mxu0
  %389 = vmatprep.mubr.f32.mxu0 0.0
  %390 = vmatmul.mubr.f32.gmra.mrb[0].mxu0 %v312
  %v391 = vpop.f32.mrb[0].mxu0
  %v392 = vadd.f32 %v295, %v391
  %v393 = vpop.f32.mrb[0].mxu0
  %394 = vmatprep.mubr.f32.mxu0 0.0
  %395 = vmatmul.mubr.f32.gmra.mrb[0].mxu0 %v315
  %v396 = vpop.f32.mrb[0].mxu0
  %v397 = vadd.f32 %v300, %v396
  %v398 = vpop.f32.mrb[0].mxu0
  %399 = vmatprep.mubr.f32.mxu0 0.0
  %400 = vmatmul.mubr.f32.gmra.mrb[0].mxu0 %v318
  %v401 = vpop.f32.mrb[0].mxu0
  %v402 = vadd.f32 %v305, %v401
  %v403 = vpop.f32.mrb[0].mxu0
  %404 = vdwg.mxu0
  %v405 = vld [vmem:[#allocation2 + $0x2] sm:$0xff]
  %v406 = vld [vmem:[#allocation2 + $0xa] sm:$0xff]
  %v407 = vld [vmem:[#allocation2 + $0x1a] sm:$0xff]
  %v408 = vld [vmem:[#allocation2 + $0x22] sm:$0xff]
  %s409 = scalar_lea.vmem %s1, 128
  %v410 = vld [vmem:[%s409] sm:$0xff]
  %v411 = vld [vmem:[%s409 + $0x8] sm:$0xff]
  %v412 = vld [vmem:[%s409 + $0x10] sm:$0xff]
  %v413 = vld [vmem:[%s409 + $0x18] sm:$0xff]
  %v414 = vld [vmem:[%s409 + $0x20] sm:$0xff]
  %v415 = vld [vmem:[%s409 + $0x28] sm:$0xff]
  %v416 = vld [vmem:[%s409 + $0x30] sm:$0xff]
  %v417 = vld [vmem:[%s409 + $0x38] sm:$0xff]
  %v419 = vsel %vm181, %v405, 0
  %v422 = vsel %vm181, %v406, 0
  %v425 = vsel %vm181, %v407, 0
  %v428 = vsel %vm181, %v408, 0
  %430 = vmatprep.subr.mxu0 0.0
  %431 = vmatpush1.msra.mxu0 %v410
  %432 = vmatprep.subr.mxu0 0.0
  %433 = vmatpush1.msra.mxu0 %v411
  %434 = vmatprep.subr.mxu0 0.0
  %435 = vmatpush1.msra.mxu0 %v412
  %436 = vmatprep.subr.mxu0 0.0
  %437 = vmatpush1.msra.mxu0 %v413
  %438 = vmatprep.subr.mxu0 0.0
  %439 = vmatpush1.msra.mxu0 %v414
  %440 = vmatprep.subr.mxu0 0.0
  %441 = vmatpush1.msra.mxu0 %v415
  %442 = vmatprep.subr.mxu0 0.0
  %443 = vmatpush1.msra.mxu0 %v416
  %444 = vmatprep.subr.mxu0 0.0
  %445 = vmatpush1.msra.mxu0 %v417
  %446 = vmatprep.subr.mxu0 0.0
  %447 = vmatpush1.msra.mxu0 0.0
  %448 = vmatprep.subr.mxu0 0.0
  %449 = vmatpush1.msra.mxu0 0.0
  %450 = vmatprep.subr.mxu0 0.0
  %451 = vmatpush1.msra.mxu0 0.0
  %452 = vmatprep.subr.mxu0 0.0
  %453 = vmatpush1.msra.mxu0 0.0
  %454 = vmatprep.subr.mxu0 0.0
  %455 = vmatpush1.msra.mxu0 0.0
  %456 = vmatprep.subr.mxu0 0.0
  %457 = vmatpush1.msra.mxu0 0.0
  %458 = vmatprep.subr.mxu0 0.0
  %459 = vmatpush1.msra.mxu0 0.0
  %460 = vmatprep.subr.mxu0 0.0
  %461 = vmatpush1.msra.mxu0 0.0
  %462 = vmatprep.subr.mxu0 0.0
  %463 = vmatpush1.msra.mxu0 0.0
  %464 = vmatprep.subr.mxu0 0.0
  %465 = vmatpush1.msra.mxu0 0.0
  %466 = vmatprep.subr.mxu0 0.0
  %467 = vmatpush1.msra.mxu0 0.0
  %468 = vmatprep.subr.mxu0 0.0
  %469 = vmatpush1.msra.mxu0 0.0
  %470 = vmatprep.subr.mxu0 0.0
  %471 = vmatpush1.msra.mxu0 0.0
  %472 = vmatprep.subr.mxu0 0.0
  %473 = vmatpush1.msra.mxu0 0.0
  %474 = vmatprep.subr.mxu0 0.0
  %475 = vmatpush1.msra.mxu0 0.0
  %476 = vmatprep.subr.mxu0 0.0
  %477 = vmatpush1.msra.mxu0 0.0
  %478 = vmatprep.subr.mxu0 0.0
  %479 = vmatpush1.msra.mxu0 0.0
  %480 = vmatprep.subr.mxu0 0.0
  %481 = vmatpush1.msra.mxu0 0.0
  %482 = vmatprep.subr.mxu0 0.0
  %483 = vmatpush1.msra.mxu0 0.0
  %484 = vmatprep.subr.mxu0 0.0
  %485 = vmatpush1.msra.mxu0 0.0
  %486 = vmatprep.subr.mxu0 0.0
  %487 = vmatpush1.msra.mxu0 0.0
  %488 = vmatprep.subr.mxu0 0.0
  %489 = vmatpush1.msra.mxu0 0.0
  %490 = vmatprep.subr.mxu0 0.0
  %491 = vmatpush1.msra.mxu0 0.0
  %492 = vmatprep.subr.mxu0 0.0
  %493 = vmatpush1.msra.mxu0 0.0
  %494 = vmatprep.mubr.f32.mxu0 0.0
  %495 = vmatmul.mubr.f32.gmra.mrb[0].mxu0 %v419
  %v496 = vpop.f32.mrb[0].mxu0
  %v497 = vadd.f32 0.0, %v496
  %v498 = vpop.f32.mrb[0].mxu0
  %499 = vmatprep.mubr.f32.mxu0 0.0
  %500 = vmatmul.mubr.f32.gmra.mrb[0].mxu0 %v422
  %v501 = vpop.f32.mrb[0].mxu0
  %v502 = vadd.f32 0.0, %v501
  %v503 = vpop.f32.mrb[0].mxu0
  %504 = vmatprep.mubr.f32.mxu0 0.0
  %505 = vmatmul.mubr.f32.gmra.mrb[0].mxu0 %v425
  %v506 = vpop.f32.mrb[0].mxu0
  %v507 = vadd.f32 0.0, %v506
  %v508 = vpop.f32.mrb[0].mxu0
  %509 = vmatprep.mubr.f32.mxu0 0.0
  %510 = vmatmul.mubr.f32.gmra.mrb[0].mxu0 %v428
  %v511 = vpop.f32.mrb[0].mxu0
  %v512 = vadd.f32 0.0, %v511
  %v513 = vpop.f32.mrb[0].mxu0
  %514 = vdwg.mxu0
  %v515 = vadd.f32 %v387, %v497
  %v516 = vadd.f32 %v392, %v502
  %v517 = vadd.f32 %v397, %v507
  %v518 = vadd.f32 %v402, %v512
  %v519 = vsel %vm181, %v515, 0.0
  %v520 = vsel %vm181, %v516, 0.0
  %v521 = vadd.f32 %v519, %v520
  %v522 = vsel %vm181, %v517, 0.0
  %v523 = vadd.f32 %v521, %v522
  %v524 = vsel %vm181, %v518, 0.0
  %v525 = vadd.f32 %v523, %v524
  %v526 = vrot.slane %v525, 4
  %v527 = vadd.f32 %v525, %v526
  %v528 = vrot.slane %v527, 2
  %v529 = vadd.f32 %v527, %v528
  %v530 = vrot.slane %v529, 1
  %v531 = vadd.f32 %v529, %v530
  %v532 = vmul.f32 %v515, %v515
  %v533 = vmul.f32 %v516, %v516
  %v534 = vmul.f32 %v517, %v517
  %v535 = vmul.f32 %v518, %v518
  %v536 = vsel %vm181, %v532, 0.0
  %v537 = vsel %vm181, %v533, 0.0
  %v538 = vadd.f32 %v536, %v537
  %v539 = vsel %vm181, %v534, 0.0
  %v540 = vadd.f32 %v538, %v539
  %v541 = vsel %vm181, %v535, 0.0
  %v542 = vadd.f32 %v540, %v541
  %v543 = vrot.slane %v542, 4
  %v544 = vadd.f32 %v542, %v543
  %v545 = vrot.slane %v544, 2
  %v546 = vadd.f32 %v544, %v545
  %v547 = vrot.slane %v546, 1
  %v548 = vadd.f32 %v546, %v547
  %v550 = vsel %vm181, %v531, 0
  %552 = vmatprep.subr.mxu0 0.0
  %553 = vmatpush1.msra.mxu0 %v149
  %554 = vmatprep.subr.mxu0 0.0
  %555 = vmatpush1.msra.mxu0 %v150
  %556 = vmatprep.subr.mxu0 0.0
  %557 = vmatpush1.msra.mxu0 %v151
  %558 = vmatprep.subr.mxu0 0.0
  %559 = vmatpush1.msra.mxu0 %v152
  %560 = vmatprep.subr.mxu0 0.0
  %561 = vmatpush1.msra.mxu0 %v153
  %562 = vmatprep.subr.mxu0 0.0
  %563 = vmatpush1.msra.mxu0 %v154
  %564 = vmatprep.subr.mxu0 0.0
  %565 = vmatpush1.msra.mxu0 %v155
  %566 = vmatprep.subr.mxu0 0.0
  %567 = vmatpush1.msra.mxu0 %v156
  %568 = vmatprep.subr.mxu0 0.0
  %569 = vmatpush1.msra.mxu0 0.0
  %570 = vmatprep.subr.mxu0 0.0
  %571 = vmatpush1.msra.mxu0 0.0
  %572 = vmatprep.subr.mxu0 0.0
  %573 = vmatpush1.msra.mxu0 0.0
  %574 = vmatprep.subr.mxu0 0.0
  %575 = vmatpush1.msra.mxu0 0.0
  %576 = vmatprep.subr.mxu0 0.0
  %577 = vmatpush1.msra.mxu0 0.0
  %578 = vmatprep.subr.mxu0 0.0
  %579 = vmatpush1.msra.mxu0 0.0
  %580 = vmatprep.subr.mxu0 0.0
  %581 = vmatpush1.msra.mxu0 0.0
  %582 = vmatprep.subr.mxu0 0.0
  %583 = vmatpush1.msra.mxu0 0.0
  %584 = vmatprep.subr.mxu0 0.0
  %585 = vmatpush1.msra.mxu0 0.0
  %586 = vmatprep.subr.mxu0 0.0
  %587 = vmatpush1.msra.mxu0 0.0
  %588 = vmatprep.subr.mxu0 0.0
  %589 = vmatpush1.msra.mxu0 0.0
  %590 = vmatprep.subr.mxu0 0.0
  %591 = vmatpush1.msra.mxu0 0.0
  %592 = vmatprep.subr.mxu0 0.0
  %593 = vmatpush1.msra.mxu0 0.0
  %594 = vmatprep.subr.mxu0 0.0
  %595 = vmatpush1.msra.mxu0 0.0
  %596 = vmatprep.subr.mxu0 0.0
  %597 = vmatpush1.msra.mxu0 0.0
  %598 = vmatprep.subr.mxu0 0.0
  %599 = vmatpush1.msra.mxu0 0.0
  %600 = vmatprep.subr.mxu0 0.0
  %601 = vmatpush1.msra.mxu0 0.0
  %602 = vmatprep.subr.mxu0 0.0
  %603 = vmatpush1.msra.mxu0 0.0
  %604 = vmatprep.subr.mxu0 0.0
  %605 = vmatpush1.msra.mxu0 0.0
  %606 = vmatprep.subr.mxu0 0.0
  %607 = vmatpush1.msra.mxu0 0.0
  %608 = vmatprep.subr.mxu0 0.0
  %609 = vmatpush1.msra.mxu0 0.0
  %610 = vmatprep.subr.mxu0 0.0
  %611 = vmatpush1.msra.mxu0 0.0
  %612 = vmatprep.subr.mxu0 0.0
  %613 = vmatpush1.msra.mxu0 0.0
  %614 = vmatprep.subr.mxu0 0.0
  %615 = vmatpush1.msra.mxu0 0.0
  %616 = vmatprep.mubr.f32.mxu0 0.0
  %617 = vmatmul.mubr.f32.gmra.mrb[0].mxu0 %v550
  %v618 = vpop.f32.mrb[0].mxu0
  %v619 = vadd.f32 0.0, %v618
  %v620 = vpop.f32.mrb[0].mxu0
  %621 = vdwg.mxu0
  %v623 = vsel %vm181, %v548, 0
  %625 = vmatprep.subr.mxu0 0.0
  %626 = vmatpush1.msra.mxu0 %v149
  %627 = vmatprep.subr.mxu0 0.0
  %628 = vmatpush1.msra.mxu0 %v150
  %629 = vmatprep.subr.mxu0 0.0
  %630 = vmatpush1.msra.mxu0 %v151
  %631 = vmatprep.subr.mxu0 0.0
  %632 = vmatpush1.msra.mxu0 %v152
  %633 = vmatprep.subr.mxu0 0.0
  %634 = vmatpush1.msra.mxu0 %v153
  %635 = vmatprep.subr.mxu0 0.0
  %636 = vmatpush1.msra.mxu0 %v154
  %637 = vmatprep.subr.mxu0 0.0
  %638 = vmatpush1.msra.mxu0 %v155
  %639 = vmatprep.subr.mxu0 0.0
  %640 = vmatpush1.msra.mxu0 %v156
  %641 = vmatprep.subr.mxu0 0.0
  %642 = vmatpush1.msra.mxu0 0.0
  %643 = vmatprep.subr.mxu0 0.0
  %644 = vmatpush1.msra.mxu0 0.0
  %645 = vmatprep.subr.mxu0 0.0
  %646 = vmatpush1.msra.mxu0 0.0
  %647 = vmatprep.subr.mxu0 0.0
  %648 = vmatpush1.msra.mxu0 0.0
  %649 = vmatprep.subr.mxu0 0.0
  %650 = vmatpush1.msra.mxu0 0.0
  %651 = vmatprep.subr.mxu0 0.0
  %652 = vmatpush1.msra.mxu0 0.0
  %653 = vmatprep.subr.mxu0 0.0
  %654 = vmatpush1.msra.mxu0 0.0
  %655 = vmatprep.subr.mxu0 0.0
  %656 = vmatpush1.msra.mxu0 0.0
  %657 = vmatprep.subr.mxu0 0.0
  %658 = vmatpush1.msra.mxu0 0.0
  %659 = vmatprep.subr.mxu0 0.0
  %660 = vmatpush1.msra.mxu0 0.0
  %661 = vmatprep.subr.mxu0 0.0
  %662 = vmatpush1.msra.mxu0 0.0
  %663 = vmatprep.subr.mxu0 0.0
  %664 = vmatpush1.msra.mxu0 0.0
  %665 = vmatprep.subr.mxu0 0.0
  %666 = vmatpush1.msra.mxu0 0.0
  %667 = vmatprep.subr.mxu0 0.0
  %668 = vmatpush1.msra.mxu0 0.0
  %669 = vmatprep.subr.mxu0 0.0
  %670 = vmatpush1.msra.mxu0 0.0
  %671 = vmatprep.subr.mxu0 0.0
  %672 = vmatpush1.msra.mxu0 0.0
  %673 = vmatprep.subr.mxu0 0.0
  %674 = vmatpush1.msra.mxu0 0.0
  %675 = vmatprep.subr.mxu0 0.0
  %676 = vmatpush1.msra.mxu0 0.0
  %677 = vmatprep.subr.mxu0 0.0
  %678 = vmatpush1.msra.mxu0 0.0
  %679 = vmatprep.subr.mxu0 0.0
  %680 = vmatpush1.msra.mxu0 0.0
  %681 = vmatprep.subr.mxu0 0.0
  %682 = vmatpush1.msra.mxu0 0.0
  %683 = vmatprep.subr.mxu0 0.0
  %684 = vmatpush1.msra.mxu0 0.0
  %685 = vmatprep.subr.mxu0 0.0
  %686 = vmatpush1.msra.mxu0 0.0
  %687 = vmatprep.subr.mxu0 0.0
  %688 = vmatpush1.msra.mxu0 0.0
  %689 = vmatprep.mubr.f32.mxu0 0.0
  %690 = vmatmul.mubr.f32.gmra.mrb[0].mxu0 %v623
  %v691 = vpop.f32.mrb[0].mxu0
  %v692 = vadd.f32 0.0, %v691
  %v693 = vpop.f32.mrb[0].mxu0
  %694 = vdwg.mxu0
  %v695 = vmul.f32 %v619, 0.001953125
  %v696 = vmul.f32 %v692, 0.001953125
  %v697 = vmul.f32 %v695, %v695
  %v698 = vsub.f32 %v696, %v697
  %v699 = vld [vmem:[%s3] sm:$0x1]
  %v700 = vadd.f32 %v698, 1e-05
  %v701 = vrsqrt.pop %v700
  %v702 = vmul.f32 %v699, %v701
  %v703 = vld [vmem:[%s4] sm:$0x1]
  %v704 = vmul.f32 %v695, %v702
  %v705 = vsub.f32 %v703, %v704
  %vm706 = vcmask 31744
  %v708 = vsel %vm706, %v702, 0
  %vm710 = vcmask 1043456
  %v712 = vsel %vm710, %v171, 0
  %714 = vmatprep.subr.mxu0 0.0
  %715 = vmatpush1.msra.mxu0 %v712
  %716 = vmatprep.subr.mxu0 0.0
  %717 = vmatpush1.msra.mxu0 0.0
  %718 = vmatprep.subr.mxu0 0.0
  %719 = vmatpush1.msra.mxu0 0.0
  %720 = vmatprep.subr.mxu0 0.0
  %721 = vmatpush1.msra.mxu0 0.0
  %722 = vmatprep.subr.mxu0 0.0
  %723 = vmatpush1.msra.mxu0 0.0
  %724 = vmatprep.subr.mxu0 0.0
  %725 = vmatpush1.msra.mxu0 0.0
  %726 = vmatprep.subr.mxu0 0.0
  %727 = vmatpush1.msra.mxu0 0.0
  %728 = vmatprep.subr.mxu0 0.0
  %729 = vmatpush1.msra.mxu0 0.0
  %730 = vmatprep.subr.mxu0 0.0
  %731 = vmatpush1.msra.mxu0 0.0
  %732 = vmatprep.subr.mxu0 0.0
  %733 = vmatpush1.msra.mxu0 0.0
  %734 = vmatprep.subr.mxu0 0.0
  %735 = vmatpush1.msra.mxu0 0.0
  %736 = vmatprep.subr.mxu0 0.0
  %737 = vmatpush1.msra.mxu0 0.0
  %738 = vmatprep.subr.mxu0 0.0
  %739 = vmatpush1.msra.mxu0 0.0
  %740 = vmatprep.subr.mxu0 0.0
  %741 = vmatpush1.msra.mxu0 0.0
  %742 = vmatprep.subr.mxu0 0.0
  %743 = vmatpush1.msra.mxu0 0.0
  %744 = vmatprep.subr.mxu0 0.0
  %745 = vmatpush1.msra.mxu0 0.0
  %746 = vmatprep.subr.mxu0 0.0
  %747 = vmatpush1.msra.mxu0 0.0
  %748 = vmatprep.subr.mxu0 0.0
  %749 = vmatpush1.msra.mxu0 0.0
  %750 = vmatprep.subr.mxu0 0.0
  %751 = vmatpush1.msra.mxu0 0.0
  %752 = vmatprep.subr.mxu0 0.0
  %753 = vmatpush1.msra.mxu0 0.0
  %754 = vmatprep.subr.mxu0 0.0
  %755 = vmatpush1.msra.mxu0 0.0
  %756 = vmatprep.subr.mxu0 0.0
  %757 = vmatpush1.msra.mxu0 0.0
  %758 = vmatprep.subr.mxu0 0.0
  %759 = vmatpush1.msra.mxu0 0.0
  %760 = vmatprep.subr.mxu0 0.0
  %761 = vmatpush1.msra.mxu0 0.0
  %762 = vmatprep.subr.mxu0 0.0
  %763 = vmatpush1.msra.mxu0 0.0
  %764 = vmatprep.subr.mxu0 0.0
  %765 = vmatpush1.msra.mxu0 0.0
  %766 = vmatprep.subr.mxu0 0.0
  %767 = vmatpush1.msra.mxu0 0.0
  %768 = vmatprep.subr.mxu0 0.0
  %769 = vmatpush1.msra.mxu0 0.0
  %770 = vmatprep.subr.mxu0 0.0
  %771 = vmatpush1.msra.mxu0 0.0
  %772 = vmatprep.subr.mxu0 0.0
  %773 = vmatpush1.msra.mxu0 0.0
  %774 = vmatprep.subr.mxu0 0.0
  %775 = vmatpush1.msra.mxu0 0.0
  %776 = vmatprep.subr.mxu0 0.0
  %777 = vmatpush1.msra.mxu0 0.0
  %778 = vmatprep.mubr.f32.mxu0 0.0
  %779 = vmatmul.mubr.f32.gmra.mrb[0].mxu0 %v708
  %v780 = vpop.f32.mrb[0].mxu0
  %v781 = vadd.f32 0.0, %v780
  %v782 = vpop.f32.mrb[0].mxu0
  %783 = vdwg.mxu0
  %v785 = vsel %vm706, %v705, 0
  %787 = vmatprep.subr.mxu0 0.0
  %788 = vmatpush1.msra.mxu0 %v712
  %789 = vmatprep.subr.mxu0 0.0
  %790 = vmatpush1.msra.mxu0 0.0
  %791 = vmatprep.subr.mxu0 0.0
  %792 = vmatpush1.msra.mxu0 0.0
  %793 = vmatprep.subr.mxu0 0.0
  %794 = vmatpush1.msra.mxu0 0.0
  %795 = vmatprep.subr.mxu0 0.0
  %796 = vmatpush1.msra.mxu0 0.0
  %797 = vmatprep.subr.mxu0 0.0
  %798 = vmatpush1.msra.mxu0 0.0
  %799 = vmatprep.subr.mxu0 0.0
  %800 = vmatpush1.msra.mxu0 0.0
  %801 = vmatprep.subr.mxu0 0.0
  %802 = vmatpush1.msra.mxu0 0.0
  %803 = vmatprep.subr.mxu0 0.0
  %804 = vmatpush1.msra.mxu0 0.0
  %805 = vmatprep.subr.mxu0 0.0
  %806 = vmatpush1.msra.mxu0 0.0
  %807 = vmatprep.subr.mxu0 0.0
  %808 = vmatpush1.msra.mxu0 0.0
  %809 = vmatprep.subr.mxu0 0.0
  %810 = vmatpush1.msra.mxu0 0.0
  %811 = vmatprep.subr.mxu0 0.0
  %812 = vmatpush1.msra.mxu0 0.0
  %813 = vmatprep.subr.mxu0 0.0
  %814 = vmatpush1.msra.mxu0 0.0
  %815 = vmatprep.subr.mxu0 0.0
  %816 = vmatpush1.msra.mxu0 0.0
  %817 = vmatprep.subr.mxu0 0.0
  %818 = vmatpush1.msra.mxu0 0.0
  %819 = vmatprep.subr.mxu0 0.0
  %820 = vmatpush1.msra.mxu0 0.0
  %821 = vmatprep.subr.mxu0 0.0
  %822 = vmatpush1.msra.mxu0 0.0
  %823 = vmatprep.subr.mxu0 0.0
  %824 = vmatpush1.msra.mxu0 0.0
  %825 = vmatprep.subr.mxu0 0.0
  %826 = vmatpush1.msra.mxu0 0.0
  %827 = vmatprep.subr.mxu0 0.0
  %828 = vmatpush1.msra.mxu0 0.0
  %829 = vmatprep.subr.mxu0 0.0
  %830 = vmatpush1.msra.mxu0 0.0
  %831 = vmatprep.subr.mxu0 0.0
  %832 = vmatpush1.msra.mxu0 0.0
  %833 = vmatprep.subr.mxu0 0.0
  %834 = vmatpush1.msra.mxu0 0.0
  %835 = vmatprep.subr.mxu0 0.0
  %836 = vmatpush1.msra.mxu0 0.0
  %837 = vmatprep.subr.mxu0 0.0
  %838 = vmatpush1.msra.mxu0 0.0
  %839 = vmatprep.subr.mxu0 0.0
  %840 = vmatpush1.msra.mxu0 0.0
  %841 = vmatprep.subr.mxu0 0.0
  %842 = vmatpush1.msra.mxu0 0.0
  %843 = vmatprep.subr.mxu0 0.0
  %844 = vmatpush1.msra.mxu0 0.0
  %845 = vmatprep.subr.mxu0 0.0
  %846 = vmatpush1.msra.mxu0 0.0
  %847 = vmatprep.subr.mxu0 0.0
  %848 = vmatpush1.msra.mxu0 0.0
  %849 = vmatprep.subr.mxu0 0.0
  %850 = vmatpush1.msra.mxu0 0.0
  %851 = vmatprep.mubr.f32.mxu0 0.0
  %852 = vmatmul.mubr.f32.gmra.mrb[0].mxu0 %v785
  %v853 = vpop.f32.mrb[0].mxu0
  %v854 = vadd.f32 0.0, %v853
  %v855 = vpop.f32.mrb[0].mxu0
  %856 = vdwg.mxu0
  %v857 = vlaneseq
  %v858 = vshrl.u32 %v857, 7
  %v859 = vsub.s32 0, %v858
  %v860 = vrot.slane %v781, %v859
  %v861 = vmul.f32 %v515, %v860
  %v862 = vmul.f32 %v516, %v860
  %v863 = vmul.f32 %v517, %v860
  %v864 = vmul.f32 %v518, %v860
  %v865 = vlaneseq
  %v866 = vshrl.u32 %v865, 7
  %v867 = vsub.s32 0, %v866
  %v868 = vrot.slane %v854, %v867
  %v869 = vadd.f32 %v861, %v868
  %v870 = vadd.f32 %v862, %v868
  %v871 = vadd.f32 %v863, %v868
  %v872 = vadd.f32 %v864, %v868
  %v873 = vmax.f32 %v869, 0.0
  %v874 = vmax.f32 %v870, 0.0
  %v875 = vmax.f32 %v871, 0.0
  %v876 = vmax.f32 %v872, 0.0
  %877 = vst.msk [vmem:[#allocation2 + $0x1] sm:$0xff] %vm181, %v873
  %878 = vst.msk [vmem:[#allocation2 + $0x9] sm:$0xff] %vm181, %v874
  %879 = vst.msk [vmem:[#allocation2 + $0x19] sm:$0xff] %vm181, %v875
  %880 = vst.msk [vmem:[#allocation2 + $0x21] sm:$0xff] %vm181, %v876
  %v881 = vld [vmem:[#allocation2] sm:$0xff]
  %v882 = vld [vmem:[#allocation2 + $0x8] sm:$0xff]
  %v883 = vld [vmem:[#allocation2 + $0x18] sm:$0xff]
  %v884 = vld [vmem:[#allocation2 + $0x20] sm:$0xff]
  %v885 = vld [vmem:[%s2] sm:$0xff]
  %v886 = vld [vmem:[%s2 + $0x8] sm:$0xff]
  %v887 = vld [vmem:[%s2 + $0x10] sm:$0xff]
  %v888 = vld [vmem:[%s2 + $0x18] sm:$0xff]
  %v889 = vld [vmem:[%s2 + $0x20] sm:$0xff]
  %v890 = vld [vmem:[%s2 + $0x28] sm:$0xff]
  %v891 = vld [vmem:[%s2 + $0x30] sm:$0xff]
  %v892 = vld [vmem:[%s2 + $0x38] sm:$0xff]
  %v893 = vld [vmem:[#allocation2 + $0x1] sm:$0xff]
  %v894 = vld [vmem:[#allocation2 + $0x9] sm:$0xff]
  %v895 = vld [vmem:[#allocation2 + $0x19] sm:$0xff]
  %v896 = vld [vmem:[#allocation2 + $0x21] sm:$0xff]
  %s897 = scalar_lea.vmem %s2, 64
  %v898 = vld [vmem:[%s897] sm:$0xff]
  %v899 = vld [vmem:[%s897 + $0x8] sm:$0xff]
  %v900 = vld [vmem:[%s897 + $0x10] sm:$0xff]
  %v901 = vld [vmem:[%s897 + $0x18] sm:$0xff]
  %v902 = vld [vmem:[%s897 + $0x20] sm:$0xff]
  %v903 = vld [vmem:[%s897 + $0x28] sm:$0xff]
  %v904 = vld [vmem:[%s897 + $0x30] sm:$0xff]
  %v905 = vld [vmem:[%s897 + $0x38] sm:$0xff]
  %v907 = vsel %vm181, %v893, 0
  %v910 = vsel %vm181, %v894, 0
  %v913 = vsel %vm181, %v895, 0
  %v916 = vsel %vm181, %v896, 0
  %918 = vmatprep.subr.mxu0 0.0
  %919 = vmatpush1.msra.mxu0 %v898
  %920 = vmatprep.subr.mxu0 0.0
  %921 = vmatpush1.msra.mxu0 %v899
  %922 = vmatprep.subr.mxu0 0.0
  %923 = vmatpush1.msra.mxu0 %v900
  %924 = vmatprep.subr.mxu0 0.0
  %925 = vmatpush1.msra.mxu0 %v901
  %926 = vmatprep.subr.mxu0 0.0
  %927 = vmatpush1.msra.mxu0 %v902
  %928 = vmatprep.subr.mxu0 0.0
  %929 = vmatpush1.msra.mxu0 %v903
  %930 = vmatprep.subr.mxu0 0.0
  %931 = vmatpush1.msra.mxu0 %v904
  %932 = vmatprep.subr.mxu0 0.0
  %933 = vmatpush1.msra.mxu0 %v905
  %934 = vmatprep.subr.mxu0 0.0
  %935 = vmatpush1.msra.mxu0 0.0
  %936 = vmatprep.subr.mxu0 0.0
  %937 = vmatpush1.msra.mxu0 0.0
  %938 = vmatprep.subr.mxu0 0.0
  %939 = vmatpush1.msra.mxu0 0.0
  %940 = vmatprep.subr.mxu0 0.0
  %941 = vmatpush1.msra.mxu0 0.0
  %942 = vmatprep.subr.mxu0 0.0
  %943 = vmatpush1.msra.mxu0 0.0
  %944 = vmatprep.subr.mxu0 0.0
  %945 = vmatpush1.msra.mxu0 0.0
  %946 = vmatprep.subr.mxu0 0.0
  %947 = vmatpush1.msra.mxu0 0.0
  %948 = vmatprep.subr.mxu0 0.0
  %949 = vmatpush1.msra.mxu0 0.0
  %950 = vmatprep.subr.mxu0 0.0
  %951 = vmatpush1.msra.mxu0 0.0
  %952 = vmatprep.subr.mxu0 0.0
  %953 = vmatpush1.msra.mxu0 0.0
  %954 = vmatprep.subr.mxu0 0.0
  %955 = vmatpush1.msra.mxu0 0.0
  %956 = vmatprep.subr.mxu0 0.0
  %957 = vmatpush1.msra.mxu0 0.0
  %958 = vmatprep.subr.mxu0 0.0
  %959 = vmatpush1.msra.mxu0 0.0
  %960 = vmatprep.subr.mxu0 0.0
  %961 = vmatpush1.msra.mxu0 0.0
  %962 = vmatprep.subr.mxu0 0.0
  %963 = vmatpush1.msra.mxu0 0.0
  %964 = vmatprep.subr.mxu0 0.0
  %965 = vmatpush1.msra.mxu0 0.0
  %966 = vmatprep.subr.mxu0 0.0
  %967 = vmatpush1.msra.mxu0 0.0
  %968 = vmatprep.subr.mxu0 0.0
  %969 = vmatpush1.msra.mxu0 0.0
  %970 = vmatprep.subr.mxu0 0.0
  %971 = vmatpush1.msra.mxu0 0.0
  %972 = vmatprep.subr.mxu0 0.0
  %973 = vmatpush1.msra.mxu0 0.0
  %974 = vmatprep.subr.mxu0 0.0
  %975 = vmatpush1.msra.mxu0 0.0
  %976 = vmatprep.subr.mxu0 0.0
  %977 = vmatpush1.msra.mxu0 0.0
  %978 = vmatprep.subr.mxu0 0.0
  %979 = vmatpush1.msra.mxu0 0.0
  %980 = vmatprep.subr.mxu0 0.0
  %981 = vmatpush1.msra.mxu0 0.0
  %982 = vmatprep.mubr.f32.mxu0 0.0
  %983 = vmatmul.mubr.f32.gmra.mrb[0].mxu0 %v907
  %v984 = vpop.f32.mrb[0].mxu0
  %v985 = vadd.f32 0.0, %v984
  %v986 = vpop.f32.mrb[0].mxu0
  %987 = vmatprep.mubr.f32.mxu0 0.0
  %988 = vmatmul.mubr.f32.gmra.mrb[0].mxu0 %v910
  %v989 = vpop.f32.mrb[0].mxu0
  %v990 = vadd.f32 0.0, %v989
  %v991 = vpop.f32.mrb[0].mxu0
  %992 = vmatprep.mubr.f32.mxu0 0.0
  %993 = vmatmul.mubr.f32.gmra.mrb[0].mxu0 %v913
  %v994 = vpop.f32.mrb[0].mxu0
  %v995 = vadd.f32 0.0, %v994
  %v996 = vpop.f32.mrb[0].mxu0
  %997 = vmatprep.mubr.f32.mxu0 0.0
  %998 = vmatmul.mubr.f32.gmra.mrb[0].mxu0 %v916
  %v999 = vpop.f32.mrb[0].mxu0
  %v1000 = vadd.f32 0.0, %v999
  %v1001 = vpop.f32.mrb[0].mxu0
  %1002 = vdwg.mxu0
  %v1004 = vsel %vm181, %v881, 0
  %v1007 = vsel %vm181, %v882, 0
  %v1010 = vsel %vm181, %v883, 0
  %v1013 = vsel %vm181, %v884, 0
  %1015 = vmatprep.subr.mxu0 0.0
  %1016 = vmatpush1.msra.mxu0 %v885
  %1017 = vmatprep.subr.mxu0 0.0
  %1018 = vmatpush1.msra.mxu0 %v886
  %1019 = vmatprep.subr.mxu0 0.0
  %1020 = vmatpush1.msra.mxu0 %v887
  %1021 = vmatprep.subr.mxu0 0.0
  %1022 = vmatpush1.msra.mxu0 %v888
  %1023 = vmatprep.subr.mxu0 0.0
  %1024 = vmatpush1.msra.mxu0 %v889
  %1025 = vmatprep.subr.mxu0 0.0
  %1026 = vmatpush1.msra.mxu0 %v890
  %1027 = vmatprep.subr.mxu0 0.0
  %1028 = vmatpush1.msra.mxu0 %v891
  %1029 = vmatprep.subr.mxu0 0.0
  %1030 = vmatpush1.msra.mxu0 %v892
  %1031 = vmatprep.subr.mxu0 0.0
  %1032 = vmatpush1.msra.mxu0 0.0
  %1033 = vmatprep.subr.mxu0 0.0
  %1034 = vmatpush1.msra.mxu0 0.0
  %1035 = vmatprep.subr.mxu0 0.0
  %1036 = vmatpush1.msra.mxu0 0.0
  %1037 = vmatprep.subr.mxu0 0.0
  %1038 = vmatpush1.msra.mxu0 0.0
  %1039 = vmatprep.subr.mxu0 0.0
  %1040 = vmatpush1.msra.mxu0 0.0
  %1041 = vmatprep.subr.mxu0 0.0
  %1042 = vmatpush1.msra.mxu0 0.0
  %1043 = vmatprep.subr.mxu0 0.0
  %1044 = vmatpush1.msra.mxu0 0.0
  %1045 = vmatprep.subr.mxu0 0.0
  %1046 = vmatpush1.msra.mxu0 0.0
  %1047 = vmatprep.subr.mxu0 0.0
  %1048 = vmatpush1.msra.mxu0 0.0
  %1049 = vmatprep.subr.mxu0 0.0
  %1050 = vmatpush1.msra.mxu0 0.0
  %1051 = vmatprep.subr.mxu0 0.0
  %1052 = vmatpush1.msra.mxu0 0.0
  %1053 = vmatprep.subr.mxu0 0.0
  %1054 = vmatpush1.msra.mxu0 0.0
  %1055 = vmatprep.subr.mxu0 0.0
  %1056 = vmatpush1.msra.mxu0 0.0
  %1057 = vmatprep.subr.mxu0 0.0
  %1058 = vmatpush1.msra.mxu0 0.0
  %1059 = vmatprep.subr.mxu0 0.0
  %1060 = vmatpush1.msra.mxu0 0.0
  %1061 = vmatprep.subr.mxu0 0.0
  %1062 = vmatpush1.msra.mxu0 0.0
  %1063 = vmatprep.subr.mxu0 0.0
  %1064 = vmatpush1.msra.mxu0 0.0
  %1065 = vmatprep.subr.mxu0 0.0
  %1066 = vmatpush1.msra.mxu0 0.0
  %1067 = vmatprep.subr.mxu0 0.0
  %1068 = vmatpush1.msra.mxu0 0.0
  %1069 = vmatprep.subr.mxu0 0.0
  %1070 = vmatpush1.msra.mxu0 0.0
  %1071 = vmatprep.subr.mxu0 0.0
  %1072 = vmatpush1.msra.mxu0 0.0
  %1073 = vmatprep.subr.mxu0 0.0
  %1074 = vmatpush1.msra.mxu0 0.0
  %1075 = vmatprep.subr.mxu0 0.0
  %1076 = vmatpush1.msra.mxu0 0.0
  %1077 = vmatprep.subr.mxu0 0.0
  %1078 = vmatpush1.msra.mxu0 0.0
  %1079 = vmatprep.mubr.f32.mxu0 0.0
  %1080 = vmatmul.mubr.f32.gmra.mrb[0].mxu0 %v1004
  %v1081 = vpop.f32.mrb[0].mxu0
  %v1082 = vadd.f32 %v985, %v1081
  %v1083 = vpop.f32.mrb[0].mxu0
  %1084 = vmatprep.mubr.f32.mxu0 0.0
  %1085 = vmatmul.mubr.f32.gmra.mrb[0].mxu0 %v1007
  %v1086 = vpop.f32.mrb[0].mxu0
  %v1087 = vadd.f32 %v990, %v1086
  %v1088 = vpop.f32.mrb[0].mxu0
  %1089 = vmatprep.mubr.f32.mxu0 0.0
  %1090 = vmatmul.mubr.f32.gmra.mrb[0].mxu0 %v1010
  %v1091 = vpop.f32.mrb[0].mxu0
  %v1092 = vadd.f32 %v995, %v1091
  %v1093 = vpop.f32.mrb[0].mxu0
  %1094 = vmatprep.mubr.f32.mxu0 0.0
  %1095 = vmatmul.mubr.f32.gmra.mrb[0].mxu0 %v1013
  %v1096 = vpop.f32.mrb[0].mxu0
  %v1097 = vadd.f32 %v1000, %v1096
  %v1098 = vpop.f32.mrb[0].mxu0
  %1099 = vdwg.mxu0
  %v1100 = vld [vmem:[#allocation2 + $0x2] sm:$0xff]
  %v1101 = vld [vmem:[#allocation2 + $0xa] sm:$0xff]
  %v1102 = vld [vmem:[#allocation2 + $0x1a] sm:$0xff]
  %v1103 = vld [vmem:[#allocation2 + $0x22] sm:$0xff]
  %s1104 = scalar_lea.vmem %s2, 128
  %v1105 = vld [vmem:[%s1104] sm:$0xff]
  %v1106 = vld [vmem:[%s1104 + $0x8] sm:$0xff]
  %v1107 = vld [vmem:[%s1104 + $0x10] sm:$0xff]
  %v1108 = vld [vmem:[%s1104 + $0x18] sm:$0xff]
  %v1109 = vld [vmem:[%s1104 + $0x20] sm:$0xff]
  %v1110 = vld [vmem:[%s1104 + $0x28] sm:$0xff]
  %v1111 = vld [vmem:[%s1104 + $0x30] sm:$0xff]
  %v1112 = vld [vmem:[%s1104 + $0x38] sm:$0xff]
  %v1114 = vsel %vm181, %v1100, 0
  %v1117 = vsel %vm181, %v1101, 0
  %v1120 = vsel %vm181, %v1102, 0
  %v1123 = vsel %vm181, %v1103, 0
  %1125 = vmatprep.subr.mxu0 0.0
  %1126 = vmatpush1.msra.mxu0 %v1105
  %1127 = vmatprep.subr.mxu0 0.0
  %1128 = vmatpush1.msra.mxu0 %v1106
  %1129 = vmatprep.subr.mxu0 0.0
  %1130 = vmatpush1.msra.mxu0 %v1107
  %1131 = vmatprep.subr.mxu0 0.0
  %1132 = vmatpush1.msra.mxu0 %v1108
  %1133 = vmatprep.subr.mxu0 0.0
  %1134 = vmatpush1.msra.mxu0 %v1109
  %1135 = vmatprep.subr.mxu0 0.0
  %1136 = vmatpush1.msra.mxu0 %v1110
  %1137 = vmatprep.subr.mxu0 0.0
  %1138 = vmatpush1.msra.mxu0 %v1111
  %1139 = vmatprep.subr.mxu0 0.0
  %1140 = vmatpush1.msra.mxu0 %v1112
  %1141 = vmatprep.subr.mxu0 0.0
  %1142 = vmatpush1.msra.mxu0 0.0
  %1143 = vmatprep.subr.mxu0 0.0
  %1144 = vmatpush1.msra.mxu0 0.0
  %1145 = vmatprep.subr.mxu0 0.0
  %1146 = vmatpush1.msra.mxu0 0.0
  %1147 = vmatprep.subr.mxu0 0.0
  %1148 = vmatpush1.msra.mxu0 0.0
  %1149 = vmatprep.subr.mxu0 0.0
  %1150 = vmatpush1.msra.mxu0 0.0
  %1151 = vmatprep.subr.mxu0 0.0
  %1152 = vmatpush1.msra.mxu0 0.0
  %1153 = vmatprep.subr.mxu0 0.0
  %1154 = vmatpush1.msra.mxu0 0.0
  %1155 = vmatprep.subr.mxu0 0.0
  %1156 = vmatpush1.msra.mxu0 0.0
  %1157 = vmatprep.subr.mxu0 0.0
  %1158 = vmatpush1.msra.mxu0 0.0
  %1159 = vmatprep.subr.mxu0 0.0
  %1160 = vmatpush1.msra.mxu0 0.0
  %1161 = vmatprep.subr.mxu0 0.0
  %1162 = vmatpush1.msra.mxu0 0.0
  %1163 = vmatprep.subr.mxu0 0.0
  %1164 = vmatpush1.msra.mxu0 0.0
  %1165 = vmatprep.subr.mxu0 0.0
  %1166 = vmatpush1.msra.mxu0 0.0
  %1167 = vmatprep.subr.mxu0 0.0
  %1168 = vmatpush1.msra.mxu0 0.0
  %1169 = vmatprep.subr.mxu0 0.0
  %1170 = vmatpush1.msra.mxu0 0.0
  %1171 = vmatprep.subr.mxu0 0.0
  %1172 = vmatpush1.msra.mxu0 0.0
  %1173 = vmatprep.subr.mxu0 0.0
  %1174 = vmatpush1.msra.mxu0 0.0
  %1175 = vmatprep.subr.mxu0 0.0
  %1176 = vmatpush1.msra.mxu0 0.0
  %1177 = vmatprep.subr.mxu0 0.0
  %1178 = vmatpush1.msra.mxu0 0.0
  %1179 = vmatprep.subr.mxu0 0.0
  %1180 = vmatpush1.msra.mxu0 0.0
  %1181 = vmatprep.subr.mxu0 0.0
  %1182 = vmatpush1.msra.mxu0 0.0
  %1183 = vmatprep.subr.mxu0 0.0
  %1184 = vmatpush1.msra.mxu0 0.0
  %1185 = vmatprep.subr.mxu0 0.0
  %1186 = vmatpush1.msra.mxu0 0.0
  %1187 = vmatprep.subr.mxu0 0.0
  %1188 = vmatpush1.msra.mxu0 0.0
  %1189 = vmatprep.mubr.f32.mxu0 0.0
  %1190 = vmatmul.mubr.f32.gmra.mrb[0].mxu0 %v1114
  %v1191 = vpop.f32.mrb[0].mxu0
  %v1192 = vadd.f32 0.0, %v1191
  %v1193 = vpop.f32.mrb[0].mxu0
  %1194 = vmatprep.mubr.f32.mxu0 0.0
  %1195 = vmatmul.mubr.f32.gmra.mrb[0].mxu0 %v1117
  %v1196 = vpop.f32.mrb[0].mxu0
  %v1197 = vadd.f32 0.0, %v1196
  %v1198 = vpop.f32.mrb[0].mxu0
  %1199 = vmatprep.mubr.f32.mxu0 0.0
  %1200 = vmatmul.mubr.f32.gmra.mrb[0].mxu0 %v1120
  %v1201 = vpop.f32.mrb[0].mxu0
  %v1202 = vadd.f32 0.0, %v1201
  %v1203 = vpop.f32.mrb[0].mxu0
  %1204 = vmatprep.mubr.f32.mxu0 0.0
  %1205 = vmatmul.mubr.f32.gmra.mrb[0].mxu0 %v1123
  %v1206 = vpop.f32.mrb[0].mxu0
  %v1207 = vadd.f32 0.0, %v1206
  %v1208 = vpop.f32.mrb[0].mxu0
  %1209 = vdwg.mxu0
  %v1210 = vadd.f32 %v1082, %v1192
  %v1211 = vadd.f32 %v1087, %v1197
  %v1212 = vadd.f32 %v1092, %v1202
  %v1213 = vadd.f32 %v1097, %v1207
  %v1214 = vsel %vm181, %v1210, 0.0
  %v1215 = vsel %vm181, %v1211, 0.0
  %v1216 = vadd.f32 %v1214, %v1215
  %v1217 = vsel %vm181, %v1212, 0.0
  %v1218 = vadd.f32 %v1216, %v1217
  %v1219 = vsel %vm181, %v1213, 0.0
  %v1220 = vadd.f32 %v1218, %v1219
  %v1221 = vrot.slane %v1220, 4
  %v1222 = vadd.f32 %v1220, %v1221
  %v1223 = vrot.slane %v1222, 2
  %v1224 = vadd.f32 %v1222, %v1223
  %v1225 = vrot.slane %v1224, 1
  %v1226 = vadd.f32 %v1224, %v1225
  %v1227 = vmul.f32 %v1210, %v1210
  %v1228 = vmul.f32 %v1211, %v1211
  %v1229 = vmul.f32 %v1212, %v1212
  %v1230 = vmul.f32 %v1213, %v1213
  %v1231 = vsel %vm181, %v1227, 0.0
  %v1232 = vsel %vm181, %v1228, 0.0
  %v1233 = vadd.f32 %v1231, %v1232
  %v1234 = vsel %vm181, %v1229, 0.0
  %v1235 = vadd.f32 %v1233, %v1234
  %v1236 = vsel %vm181, %v1230, 0.0
  %v1237 = vadd.f32 %v1235, %v1236
  %v1238 = vrot.slane %v1237, 4
  %v1239 = vadd.f32 %v1237, %v1238
  %v1240 = vrot.slane %v1239, 2
  %v1241 = vadd.f32 %v1239, %v1240
  %v1242 = vrot.slane %v1241, 1
  %v1243 = vadd.f32 %v1241, %v1242
  %v1245 = vsel %vm181, %v1226, 0
  %1247 = vmatprep.subr.mxu0 0.0
  %1248 = vmatpush1.msra.mxu0 %v149
  %1249 = vmatprep.subr.mxu0 0.0
  %1250 = vmatpush1.msra.mxu0 %v150
  %1251 = vmatprep.subr.mxu0 0.0
  %1252 = vmatpush1.msra.mxu0 %v151
  %1253 = vmatprep.subr.mxu0 0.0
  %1254 = vmatpush1.msra.mxu0 %v152
  %1255 = vmatprep.subr.mxu0 0.0
  %1256 = vmatpush1.msra.mxu0 %v153
  %1257 = vmatprep.subr.mxu0 0.0
  %1258 = vmatpush1.msra.mxu0 %v154
  %1259 = vmatprep.subr.mxu0 0.0
  %1260 = vmatpush1.msra.mxu0 %v155
  %1261 = vmatprep.subr.mxu0 0.0
  %1262 = vmatpush1.msra.mxu0 %v156
  %1263 = vmatprep.subr.mxu0 0.0
  %1264 = vmatpush1.msra.mxu0 0.0
  %1265 = vmatprep.subr.mxu0 0.0
  %1266 = vmatpush1.msra.mxu0 0.0
  %1267 = vmatprep.subr.mxu0 0.0
  %1268 = vmatpush1.msra.mxu0 0.0
  %1269 = vmatprep.subr.mxu0 0.0
  %1270 = vmatpush1.msra.mxu0 0.0
  %1271 = vmatprep.subr.mxu0 0.0
  %1272 = vmatpush1.msra.mxu0 0.0
  %1273 = vmatprep.subr.mxu0 0.0
  %1274 = vmatpush1.msra.mxu0 0.0
  %1275 = vmatprep.subr.mxu0 0.0
  %1276 = vmatpush1.msra.mxu0 0.0
  %1277 = vmatprep.subr.mxu0 0.0
  %1278 = vmatpush1.msra.mxu0 0.0
  %1279 = vmatprep.subr.mxu0 0.0
  %1280 = vmatpush1.msra.mxu0 0.0
  %1281 = vmatprep.subr.mxu0 0.0
  %1282 = vmatpush1.msra.mxu0 0.0
  %1283 = vmatprep.subr.mxu0 0.0
  %1284 = vmatpush1.msra.mxu0 0.0
  %1285 = vmatprep.subr.mxu0 0.0
  %1286 = vmatpush1.msra.mxu0 0.0
  %1287 = vmatprep.subr.mxu0 0.0
  %1288 = vmatpush1.msra.mxu0 0.0
  %1289 = vmatprep.subr.mxu0 0.0
  %1290 = vmatpush1.msra.mxu0 0.0
  %1291 = vmatprep.subr.mxu0 0.0
  %1292 = vmatpush1.msra.mxu0 0.0
  %1293 = vmatprep.subr.mxu0 0.0
  %1294 = vmatpush1.msra.mxu0 0.0
  %1295 = vmatprep.subr.mxu0 0.0
  %1296 = vmatpush1.msra.mxu0 0.0
  %1297 = vmatprep.subr.mxu0 0.0
  %1298 = vmatpush1.msra.mxu0 0.0
  %1299 = vmatprep.subr.mxu0 0.0
  %1300 = vmatpush1.msra.mxu0 0.0
  %1301 = vmatprep.subr.mxu0 0.0
  %1302 = vmatpush1.msra.mxu0 0.0
  %1303 = vmatprep.subr.mxu0 0.0
  %1304 = vmatpush1.msra.mxu0 0.0
  %1305 = vmatprep.subr.mxu0 0.0
  %1306 = vmatpush1.msra.mxu0 0.0
  %1307 = vmatprep.subr.mxu0 0.0
  %1308 = vmatpush1.msra.mxu0 0.0
  %1309 = vmatprep.subr.mxu0 0.0
  %1310 = vmatpush1.msra.mxu0 0.0
  %1311 = vmatprep.mubr.f32.mxu0 0.0
  %1312 = vmatmul.mubr.f32.gmra.mrb[0].mxu0 %v1245
  %v1313 = vpop.f32.mrb[0].mxu0
  %v1314 = vadd.f32 0.0, %v1313
  %v1315 = vpop.f32.mrb[0].mxu0
  %1316 = vdwg.mxu0
  %v1318 = vsel %vm181, %v1243, 0
  %1320 = vmatprep.subr.mxu0 0.0
  %1321 = vmatpush1.msra.mxu0 %v149
  %1322 = vmatprep.subr.mxu0 0.0
  %1323 = vmatpush1.msra.mxu0 %v150
  %1324 = vmatprep.subr.mxu0 0.0
  %1325 = vmatpush1.msra.mxu0 %v151
  %1326 = vmatprep.subr.mxu0 0.0
  %1327 = vmatpush1.msra.mxu0 %v152
  %1328 = vmatprep.subr.mxu0 0.0
  %1329 = vmatpush1.msra.mxu0 %v153
  %1330 = vmatprep.subr.mxu0 0.0
  %1331 = vmatpush1.msra.mxu0 %v154
  %1332 = vmatprep.subr.mxu0 0.0
  %1333 = vmatpush1.msra.mxu0 %v155
  %1334 = vmatprep.subr.mxu0 0.0
  %1335 = vmatpush1.msra.mxu0 %v156
  %1336 = vmatprep.subr.mxu0 0.0
  %1337 = vmatpush1.msra.mxu0 0.0
  %1338 = vmatprep.subr.mxu0 0.0
  %1339 = vmatpush1.msra.mxu0 0.0
  %1340 = vmatprep.subr.mxu0 0.0
  %1341 = vmatpush1.msra.mxu0 0.0
  %1342 = vmatprep.subr.mxu0 0.0
  %1343 = vmatpush1.msra.mxu0 0.0
  %1344 = vmatprep.subr.mxu0 0.0
  %1345 = vmatpush1.msra.mxu0 0.0
  %1346 = vmatprep.subr.mxu0 0.0
  %1347 = vmatpush1.msra.mxu0 0.0
  %1348 = vmatprep.subr.mxu0 0.0
  %1349 = vmatpush1.msra.mxu0 0.0
  %1350 = vmatprep.subr.mxu0 0.0
  %1351 = vmatpush1.msra.mxu0 0.0
  %1352 = vmatprep.subr.mxu0 0.0
  %1353 = vmatpush1.msra.mxu0 0.0
  %1354 = vmatprep.subr.mxu0 0.0
  %1355 = vmatpush1.msra.mxu0 0.0
  %1356 = vmatprep.subr.mxu0 0.0
  %1357 = vmatpush1.msra.mxu0 0.0
  %1358 = vmatprep.subr.mxu0 0.0
  %1359 = vmatpush1.msra.mxu0 0.0
  %1360 = vmatprep.subr.mxu0 0.0
  %1361 = vmatpush1.msra.mxu0 0.0
  %1362 = vmatprep.subr.mxu0 0.0
  %1363 = vmatpush1.msra.mxu0 0.0
  %1364 = vmatprep.subr.mxu0 0.0
  %1365 = vmatpush1.msra.mxu0 0.0
  %1366 = vmatprep.subr.mxu0 0.0
  %1367 = vmatpush1.msra.mxu0 0.0
  %1368 = vmatprep.subr.mxu0 0.0
  %1369 = vmatpush1.msra.mxu0 0.0
  %1370 = vmatprep.subr.mxu0 0.0
  %1371 = vmatpush1.msra.mxu0 0.0
  %1372 = vmatprep.subr.mxu0 0.0
  %1373 = vmatpush1.msra.mxu0 0.0
  %1374 = vmatprep.subr.mxu0 0.0
  %1375 = vmatpush1.msra.mxu0 0.0
  %1376 = vmatprep.subr.mxu0 0.0
  %1377 = vmatpush1.msra.mxu0 0.0
  %1378 = vmatprep.subr.mxu0 0.0
  %1379 = vmatpush1.msra.mxu0 0.0
  %1380 = vmatprep.subr.mxu0 0.0
  %1381 = vmatpush1.msra.mxu0 0.0
  %1382 = vmatprep.subr.mxu0 0.0
  %1383 = vmatpush1.msra.mxu0 0.0
  %1384 = vmatprep.mubr.f32.mxu0 0.0
  %1385 = vmatmul.mubr.f32.gmra.mrb[0].mxu0 %v1318
  %v1386 = vpop.f32.mrb[0].mxu0
  %v1387 = vadd.f32 0.0, %v1386
  %v1388 = vpop.f32.mrb[0].mxu0
  %1389 = vdwg.mxu0
  %v1390 = vmul.f32 %v1314, 0.001953125
  %v1391 = vmul.f32 %v1387, 0.001953125
  %v1392 = vmul.f32 %v1390, %v1390
  %v1393 = vsub.f32 %v1391, %v1392
  %v1394 = vld [vmem:[%s5] sm:$0x1]
  %v1395 = vadd.f32 %v1393, 1e-05
  %v1396 = vrsqrt.pop %v1395
  %v1397 = vmul.f32 %v1394, %v1396
  %v1398 = vld [vmem:[%s6] sm:$0x1]
  %v1399 = vmul.f32 %v1390, %v1397
  %v1400 = vsub.f32 %v1398, %v1399
  %v1402 = vsel %vm706, %v1397, 0
  %1404 = vmatprep.subr.mxu0 0.0
  %1405 = vmatpush1.msra.mxu0 %v712
  %1406 = vmatprep.subr.mxu0 0.0
  %1407 = vmatpush1.msra.mxu0 0.0
  %1408 = vmatprep.subr.mxu0 0.0
  %1409 = vmatpush1.msra.mxu0 0.0
  %1410 = vmatprep.subr.mxu0 0.0
  %1411 = vmatpush1.msra.mxu0 0.0
  %1412 = vmatprep.subr.mxu0 0.0
  %1413 = vmatpush1.msra.mxu0 0.0
  %1414 = vmatprep.subr.mxu0 0.0
  %1415 = vmatpush1.msra.mxu0 0.0
  %1416 = vmatprep.subr.mxu0 0.0
  %1417 = vmatpush1.msra.mxu0 0.0
  %1418 = vmatprep.subr.mxu0 0.0
  %1419 = vmatpush1.msra.mxu0 0.0
  %1420 = vmatprep.subr.mxu0 0.0
  %1421 = vmatpush1.msra.mxu0 0.0
  %1422 = vmatprep.subr.mxu0 0.0
  %1423 = vmatpush1.msra.mxu0 0.0
  %1424 = vmatprep.subr.mxu0 0.0
  %1425 = vmatpush1.msra.mxu0 0.0
  %1426 = vmatprep.subr.mxu0 0.0
  %1427 = vmatpush1.msra.mxu0 0.0
  %1428 = vmatprep.subr.mxu0 0.0
  %1429 = vmatpush1.msra.mxu0 0.0
  %1430 = vmatprep.subr.mxu0 0.0
  %1431 = vmatpush1.msra.mxu0 0.0
  %1432 = vmatprep.subr.mxu0 0.0
  %1433 = vmatpush1.msra.mxu0 0.0
  %1434 = vmatprep.subr.mxu0 0.0
  %1435 = vmatpush1.msra.mxu0 0.0
  %1436 = vmatprep.subr.mxu0 0.0
  %1437 = vmatpush1.msra.mxu0 0.0
  %1438 = vmatprep.subr.mxu0 0.0
  %1439 = vmatpush1.msra.mxu0 0.0
  %1440 = vmatprep.subr.mxu0 0.0
  %1441 = vmatpush1.msra.mxu0 0.0
  %1442 = vmatprep.subr.mxu0 0.0
  %1443 = vmatpush1.msra.mxu0 0.0
  %1444 = vmatprep.subr.mxu0 0.0
  %1445 = vmatpush1.msra.mxu0 0.0
  %1446 = vmatprep.subr.mxu0 0.0
  %1447 = vmatpush1.msra.mxu0 0.0
  %1448 = vmatprep.subr.mxu0 0.0
  %1449 = vmatpush1.msra.mxu0 0.0
  %1450 = vmatprep.subr.mxu0 0.0
  %1451 = vmatpush1.msra.mxu0 0.0
  %1452 = vmatprep.subr.mxu0 0.0
  %1453 = vmatpush1.msra.mxu0 0.0
  %1454 = vmatprep.subr.mxu0 0.0
  %1455 = vmatpush1.msra.mxu0 0.0
  %1456 = vmatprep.subr.mxu0 0.0
  %1457 = vmatpush1.msra.mxu0 0.0
  %1458 = vmatprep.subr.mxu0 0.0
  %1459 = vmatpush1.msra.mxu0 0.0
  %1460 = vmatprep.subr.mxu0 0.0
  %1461 = vmatpush1.msra.mxu0 0.0
  %1462 = vmatprep.subr.mxu0 0.0
  %1463 = vmatpush1.msra.mxu0 0.0
  %1464 = vmatprep.subr.mxu0 0.0
  %1465 = vmatpush1.msra.mxu0 0.0
  %1466 = vmatprep.subr.mxu0 0.0
  %1467 = vmatpush1.msra.mxu0 0.0
  %1468 = vmatprep.mubr.f32.mxu0 0.0
  %1469 = vmatmul.mubr.f32.gmra.mrb[0].mxu0 %v1402
  %v1470 = vpop.f32.mrb[0].mxu0
  %v1471 = vadd.f32 0.0, %v1470
  %v1472 = vpop.f32.mrb[0].mxu0
  %1473 = vdwg.mxu0
  %v1475 = vsel %vm706, %v1400, 0
  %1477 = vmatprep.subr.mxu0 0.0
  %1478 = vmatpush1.msra.mxu0 %v712
  %1479 = vmatprep.subr.mxu0 0.0
  %1480 = vmatpush1.msra.mxu0 0.0
  %1481 = vmatprep.subr.mxu0 0.0
  %1482 = vmatpush1.msra.mxu0 0.0
  %1483 = vmatprep.subr.mxu0 0.0
  %1484 = vmatpush1.msra.mxu0 0.0
  %1485 = vmatprep.subr.mxu0 0.0
  %1486 = vmatpush1.msra.mxu0 0.0
  %1487 = vmatprep.subr.mxu0 0.0
  %1488 = vmatpush1.msra.mxu0 0.0
  %1489 = vmatprep.subr.mxu0 0.0
  %1490 = vmatpush1.msra.mxu0 0.0
  %1491 = vmatprep.subr.mxu0 0.0
  %1492 = vmatpush1.msra.mxu0 0.0
  %1493 = vmatprep.subr.mxu0 0.0
  %1494 = vmatpush1.msra.mxu0 0.0
  %1495 = vmatprep.subr.mxu0 0.0
  %1496 = vmatpush1.msra.mxu0 0.0
  %1497 = vmatprep.subr.mxu0 0.0
  %1498 = vmatpush1.msra.mxu0 0.0
  %1499 = vmatprep.subr.mxu0 0.0
  %1500 = vmatpush1.msra.mxu0 0.0
  %1501 = vmatprep.subr.mxu0 0.0
  %1502 = vmatpush1.msra.mxu0 0.0
  %1503 = vmatprep.subr.mxu0 0.0
  %1504 = vmatpush1.msra.mxu0 0.0
  %1505 = vmatprep.subr.mxu0 0.0
  %1506 = vmatpush1.msra.mxu0 0.0
  %1507 = vmatprep.subr.mxu0 0.0
  %1508 = vmatpush1.msra.mxu0 0.0
  %1509 = vmatprep.subr.mxu0 0.0
  %1510 = vmatpush1.msra.mxu0 0.0
  %1511 = vmatprep.subr.mxu0 0.0
  %1512 = vmatpush1.msra.mxu0 0.0
  %1513 = vmatprep.subr.mxu0 0.0
  %1514 = vmatpush1.msra.mxu0 0.0
  %1515 = vmatprep.subr.mxu0 0.0
  %1516 = vmatpush1.msra.mxu0 0.0
  %1517 = vmatprep.subr.mxu0 0.0
  %1518 = vmatpush1.msra.mxu0 0.0
  %1519 = vmatprep.subr.mxu0 0.0
  %1520 = vmatpush1.msra.mxu0 0.0
  %1521 = vmatprep.subr.mxu0 0.0
  %1522 = vmatpush1.msra.mxu0 0.0
  %1523 = vmatprep.subr.mxu0 0.0
  %1524 = vmatpush1.msra.mxu0 0.0
  %1525 = vmatprep.subr.mxu0 0.0
  %1526 = vmatpush1.msra.mxu0 0.0
  %1527 = vmatprep.subr.mxu0 0.0
  %1528 = vmatpush1.msra.mxu0 0.0
  %1529 = vmatprep.subr.mxu0 0.0
  %1530 = vmatpush1.msra.mxu0 0.0
  %1531 = vmatprep.subr.mxu0 0.0
  %1532 = vmatpush1.msra.mxu0 0.0
  %1533 = vmatprep.subr.mxu0 0.0
  %1534 = vmatpush1.msra.mxu0 0.0
  %1535 = vmatprep.subr.mxu0 0.0
  %1536 = vmatpush1.msra.mxu0 0.0
  %1537 = vmatprep.subr.mxu0 0.0
  %1538 = vmatpush1.msra.mxu0 0.0
  %1539 = vmatprep.subr.mxu0 0.0
  %1540 = vmatpush1.msra.mxu0 0.0
  %1541 = vmatprep.mubr.f32.mxu0 0.0
  %1542 = vmatmul.mubr.f32.gmra.mrb[0].mxu0 %v1475
  %v1543 = vpop.f32.mrb[0].mxu0
  %v1544 = vadd.f32 0.0, %v1543
  %v1545 = vpop.f32.mrb[0].mxu0
  %1546 = vdwg.mxu0
  %v1547 = vlaneseq
  %v1548 = vshrl.u32 %v1547, 7
  %v1549 = vsub.s32 0, %v1548
  %v1550 = vrot.slane %v1471, %v1549
  %v1551 = vmul.f32 %v1210, %v1550
  %v1552 = vmul.f32 %v1211, %v1550
  %v1553 = vmul.f32 %v1212, %v1550
  %v1554 = vmul.f32 %v1213, %v1550
  %v1555 = vlaneseq
  %v1556 = vshrl.u32 %v1555, 7
  %v1557 = vsub.s32 0, %v1556
  %v1558 = vrot.slane %v1544, %v1557
  %v1559 = vadd.f32 %v1551, %v1558
  %v1560 = vadd.f32 %v1552, %v1558
  %v1561 = vadd.f32 %v1553, %v1558
  %v1562 = vadd.f32 %v1554, %v1558
  %v1563 = vld [vmem:[%s0] sm:$0xff]
  %v1564 = vld [vmem:[%s0 + $0x8] sm:$0xff]
  %v1565 = vld [vmem:[%s0 + $0x10] sm:$0xff]
  %v1566 = vld [vmem:[%s0 + $0x18] sm:$0xff]
  %v1567 = vadd.f32 %v1559, %v1563
  %v1568 = vadd.f32 %v1560, %v1564
  %v1569 = vadd.f32 %v1561, %v1565
  %v1570 = vadd.f32 %v1562, %v1566
  %v1571 = vmax.f32 %v1567, 0.0
  %v1572 = vmax.f32 %v1568, 0.0
  %v1573 = vmax.f32 %v1569, 0.0
  %v1574 = vmax.f32 %v1570, 0.0
  %1575 = vst.msk [vmem:[%s7] sm:$0xff] %vm181, %v1571
  %1576 = vst.msk [vmem:[%s7 + $0x8] sm:$0xff] %vm181, %v1572
  %1577 = vst.msk [vmem:[%s7 + $0x10] sm:$0xff] %vm181, %v1573
  %1578 = vst.msk [vmem:[%s7 + $0x18] sm:$0xff] %vm181, %v1574
  // Predicated region
  $region30: #{basic_block_nchw.1} parent=0 // pred_check
    _
  $region31: #{basic_block_nchw.1} parent=0 // pred_check_branch
    %1580 = sbr.rel (0) target = $region33
  $region32: #{basic_block_nchw.1} parent=0 // pred_region
    _
  $region33: #{basic_block_nchw.1} parent=0 // pred_fallthru
    _
  // Predicated region
  $region34: #{basic_block_nchw.1} parent=0 // pred_check
    _
  $region35: #{basic_block_nchw.1} parent=0 // pred_check_branch
    %1582 = sbr.rel (0) target = $region37
  $region36: #{basic_block_nchw.1} parent=0 // pred_region
    _
  $region37: #{basic_block_nchw.1} parent=0 // pred_fallthru
    _

</llo_original>
